<compile_context>
chip_gen: v6e
topology: v6e:2x2x1
jax: 0.10.0
libtpu: 0.0.40
codegen_flags: <defaults>
</compile_context>

<pallas_src>
import functools

import jax
import jax.numpy as jnp
from jax.experimental import pallas as pl
from jax.experimental.pallas import tpu as pltpu

# ---- HP constants -----------------------------------------------------------
HP_DROPOUT = 0.0
HP_NONLIN_TANH = False            # -> ReLU branch
HP_BOTTLENECK_EXPANSION_RATIO = 2
HP_LAYER_NORM = True
LN_EPS = 1e-5


def _round_up(x: int, m: int) -> int:
    return ((x + m - 1) // m) * m


# ---- Pallas kernel: Linear -> ReLU -> Linear -> LayerNorm on a (B_tile, *) tile ----
def _make_kernel(arit: int, dim: int):
    def kernel(*refs):
        x_refs = refs[:arit]                                   # arit x (B_tile, dim)
        w1_ref, b1_ref, w2_ref, b2_ref, g_ref, beta_ref, o_ref = refs[arit:]

        # first = Linear(arit*dim, hidden), computed as a sum of per-argument partial
        # matmuls (equivalent to concat(x) @ W1). bf16 operands, f32 accumulation.
        acc = jnp.dot(x_refs[0][...].astype(jnp.bfloat16),
                      w1_ref[0:dim, :],
                      preferred_element_type=jnp.float32)
        for i in range(1, arit):
            acc = acc + jnp.dot(x_refs[i][...].astype(jnp.bfloat16),
                                w1_ref[i * dim:(i + 1) * dim, :],
                                preferred_element_type=jnp.float32)

        # bias + ReLU (HP.NONLIN != TANH) in f32
        h = jnp.maximum(acc + b1_ref[...], 0.0)

        # second = Linear(hidden, dim): bf16 MXU, f32 accumulate
        y = jnp.dot(h.astype(jnp.bfloat16), w2_ref[...],
                    preferred_element_type=jnp.float32) + b2_ref[...]

        # epilog = LayerNorm(dim), strictly f32 per row
        mean = jnp.mean(y, axis=-1, keepdims=True)
        var = jnp.mean((y - mean) ** 2, axis=-1, keepdims=True)
        yn = (y - mean) * jax.lax.rsqrt(var + LN_EPS)
        o_ref[...] = (yn * g_ref[...] + beta_ref[...]).astype(o_ref.dtype)

    return kernel


@functools.partial(jax.jit, static_argnames=("b_tile",))
def _cat_nonlin_pallas(xs, w1, b1, w2, b2, gamma, beta, *, b_tile):
    arit = len(xs)
    B, dim = xs[0].shape
    hidden = w1.shape[1]
    assert B % b_tile == 0
    grid = (B // b_tile,)

    x_spec = pl.BlockSpec((b_tile, dim), lambda i: (i, 0))
    resident = lambda shape: pl.BlockSpec(shape, lambda i: (0, 0))  # VMEM-resident

    flops = 2 * B * (arit * dim * hidden + hidden * dim)
    bytes_accessed = (sum(int(x.size) * x.dtype.itemsize for x in xs)
                      + int(w1.size) * w1.dtype.itemsize
                      + int(w2.size) * w2.dtype.itemsize
                      + int(b1.size + b2.size + gamma.size + beta.size) * 4
                      + B * dim * 4)
    cost = pl.CostEstimate(flops=flops, transcendentals=B,
                           bytes_accessed=bytes_accessed)

    return pl.pallas_call(
        _make_kernel(arit, dim),
        out_shape=jax.ShapeDtypeStruct((B, dim), jnp.float32),
        grid=grid,
        in_specs=[x_spec] * arit + [
            resident(w1.shape), resident(b1.shape),
            resident(w2.shape), resident(b2.shape),
            resident(gamma.shape), resident(beta.shape),
        ],
        out_specs=pl.BlockSpec((b_tile, dim), lambda i: (i, 0)),
        compiler_params=pltpu.CompilerParams(
            dimension_semantics=("parallel",)),
        cost_estimate=cost,
    )(*xs, w1, b1, w2, b2, gamma, beta)


# ---- Module-like wrapper -----------------------------------------------------
class CatAndNonLinear:
    def __init__(self, dim: int, arit: int, key, b_tile: int = 128):
        self.dim = dim
        self.arit = arit
        self.b_tile = b_tile
        hidden = dim * HP_BOTTLENECK_EXPANSION_RATIO
        in1 = arit * dim
        k1, k2, k3, k4 = jax.random.split(key, 4)
        # PyTorch nn.Linear default init: U(-1/sqrt(fan_in), 1/sqrt(fan_in))
        lim1 = 1.0 / jnp.sqrt(jnp.float32(in1))
        lim2 = 1.0 / jnp.sqrt(jnp.float32(hidden))
        # Weights stored (in, out) and in bf16 for the MXU (f32 accumulation in-kernel).
        self.w1 = jax.random.uniform(k1, (in1, hidden), jnp.float32,
                                     -lim1, lim1).astype(jnp.bfloat16)
        self.b1 = jax.random.uniform(k2, (1, hidden), jnp.float32, -lim1, lim1)
        self.w2 = jax.random.uniform(k3, (hidden, dim), jnp.float32,
                                     -lim2, lim2).astype(jnp.bfloat16)
        self.b2 = jax.random.uniform(k4, (1, dim), jnp.float32, -lim2, lim2)
        # LayerNorm(dim) default params
        self.gamma = jnp.ones((1, dim), jnp.float32)
        self.beta = jnp.zeros((1, dim), jnp.float32)

    def forward_impl_batched(self, args):
        """args: list of `arit` arrays, each (B, dim). Returns (B, dim)."""
        assert len(args) == self.arit
        B = args[0].shape[0]
        # prolog: Dropout(0.0) == Identity
        b_tile = min(self.b_tile, _round_up(B, 8))      # multiple of 8 sublanes
        Bp = _round_up(B, b_tile)
        xs = tuple(jnp.pad(a, ((0, Bp - B), (0, 0))) if Bp != B else a
                   for a in args)
        out = _cat_nonlin_pallas(xs, self.w1, self.b1, self.w2, self.b2,
                                 self.gamma, self.beta, b_tile=b_tile)
        return out[:B]

    def forward_impl(self, args):
        """Single invocation: list of `arit` vectors of shape (dim,) -> (dim,)."""
        xs = [a.reshape(1, -1) for a in args]
        return self.forward_impl_batched(xs)[0]

    def forward(self, args):
        # Faithful to the PyTorch source: forward() is a stub returning args[0].
        return args[0]


# ---- Pure-JAX reference (same bf16 weights, f32 accumulation) -----------------
def _ref_forward_impl_batched(mod, args):
    x = jnp.concatenate(args, axis=-1).astype(jnp.bfloat16)
    h = jnp.maximum(jnp.dot(x, mod.w1, preferred_element_type=jnp.float32)
                    + mod.b1, 0.0)
    y = jnp.dot(h.astype(jnp.bfloat16), mod.w2,
                preferred_element_type=jnp.float32) + mod.b2
    mean = jnp.mean(y, axis=-1, keepdims=True)
    var = jnp.mean((y - mean) ** 2, axis=-1, keepdims=True)
    return (y - mean) * jax.lax.rsqrt(var + LN_EPS) * mod.gamma + mod.beta


if __name__ == "__main__":
    # dim=128 keeps the output lane-dense; B=512 with B_tile=128 -> grid=(4,).
    dim, arit, B = 128, 2, 512
    key = jax.random.PRNGKey(0)
    kp, ka = jax.random.split(key)
    mod = CatAndNonLinear(dim, arit, kp, b_tile=128)

    arg_keys = jax.random.split(ka, arit)
    args_b = [jax.random.normal(k, (B, dim), jnp.float32) for k in arg_keys]

    # Batched path: one pallas_call covering 512 module invocations.
    out = jax.block_until_ready(mod.forward_impl_batched(args_b))
    ref = _ref_forward_impl_batched(mod, args_b)
    assert out.shape == (B, dim)
    assert jnp.allclose(out, ref, atol=2e-3, rtol=2e-3), \
        "batched mismatch vs pure-JAX reference"

    # Single-invocation path (list of (dim,) vectors, like the PyTorch module).
    args1 = [a[0] for a in args_b]
    out1 = jax.block_until_ready(mod.forward_impl(args1))
    assert out1.shape == (dim,)
    assert jnp.allclose(out1, ref[0], atol=2e-3, rtol=2e-3), \
        "single-call mismatch vs pure-JAX reference"

    # forward() stub semantics preserved
    assert jnp.array_equal(mod.forward(args1), args1[0])

    print("KERNEL_OK")
</pallas_src>

<mosaic_0001>
module attributes {stable_mosaic.version = 11 : i64} {
  func.func @kernel(%arg0: i32, %arg1: memref<128x128xf32, #tpu.memory_space<vmem>>, %arg2: memref<128x128xf32, #tpu.memory_space<vmem>>, %arg3: memref<256x256xbf16, #tpu.memory_space<vmem>>, %arg4: memref<1x256xf32, #tpu.memory_space<vmem>>, %arg5: memref<256x128xbf16, #tpu.memory_space<vmem>>, %arg6: memref<1x128xf32, #tpu.memory_space<vmem>>, %arg7: memref<1x128xf32, #tpu.memory_space<vmem>>, %arg8: memref<1x128xf32, #tpu.memory_space<vmem>>, %arg9: memref<128x128xf32, #tpu.memory_space<vmem>>) attributes {dimension_semantics = [#tpu.dimension_semantics<parallel>], iteration_bounds = array<i64: 4>, scalar_prefetch = 0 : i64, scratch_operands = 0 : i64, tpu.core_type = #tpu.core_type<tc>, window_params = [{transform_indices = @transform_0, window_bounds = array<i64: 128, 128>}, {transform_indices = @transform_1, window_bounds = array<i64: 128, 128>}, {pipeline_mode = #tpu.pipeline_mode<synchronous>, transform_indices = @transform_2, window_bounds = array<i64: 256, 256>}, {pipeline_mode = #tpu.pipeline_mode<synchronous>, transform_indices = @transform_3, window_bounds = array<i64: 1, 256>}, {pipeline_mode = #tpu.pipeline_mode<synchronous>, transform_indices = @transform_4, window_bounds = array<i64: 256, 128>}, {pipeline_mode = #tpu.pipeline_mode<synchronous>, transform_indices = @transform_5, window_bounds = array<i64: 1, 128>}, {pipeline_mode = #tpu.pipeline_mode<synchronous>, transform_indices = @transform_6, window_bounds = array<i64: 1, 128>}, {pipeline_mode = #tpu.pipeline_mode<synchronous>, transform_indices = @transform_7, window_bounds = array<i64: 1, 128>}, {transform_indices = @transform_8, window_bounds = array<i64: 128, 128>}]} {
    %c0 = arith.constant 0 : index
    %c0_0 = arith.constant 0 : index
    %0 = vector.load %arg1[%c0, %c0_0] : memref<128x128xf32, #tpu.memory_space<vmem>>, vector<128x128xf32>
    %1 = arith.truncf %0 : vector<128x128xf32> to vector<128x128xbf16>
    %c0_1 = arith.constant 0 : index
    %c0_2 = arith.constant 0 : index
    %2 = vector.load %arg3[%c0_1, %c0_2] : memref<256x256xbf16, #tpu.memory_space<vmem>>, vector<128x256xbf16>
    %cst = arith.constant dense<0.000000e+00> : vector<128x256xf32>
    %3 = tpu.matmul %1, %2, %cst {dimension_numbers = #tpu.dot_dimension_numbers<[1], [0], [0], [1], [0, 0, 1, 1], [], []>} : vector<128x128xbf16>, vector<128x256xbf16>, vector<128x256xf32> -> vector<128x256xf32>
    %c0_3 = arith.constant 0 : index
    %c0_4 = arith.constant 0 : index
    %4 = vector.load %arg2[%c0_3, %c0_4] : memref<128x128xf32, #tpu.memory_space<vmem>>, vector<128x128xf32>
    %5 = arith.truncf %4 : vector<128x128xf32> to vector<128x128xbf16>
    %c128 = arith.constant 128 : index
    %c0_5 = arith.constant 0 : index
    %6 = vector.load %arg3[%c128, %c0_5] : memref<256x256xbf16, #tpu.memory_space<vmem>>, vector<128x256xbf16>
    %cst_6 = arith.constant dense<0.000000e+00> : vector<128x256xf32>
    %7 = tpu.matmul %5, %6, %cst_6 {dimension_numbers = #tpu.dot_dimension_numbers<[1], [0], [0], [1], [0, 0, 1, 1], [], []>} : vector<128x128xbf16>, vector<128x256xbf16>, vector<128x256xf32> -> vector<128x256xf32>
    %8 = arith.addf %3, %7 : vector<128x256xf32>
    %c0_7 = arith.constant 0 : index
    %c0_8 = arith.constant 0 : index
    %9 = vector.load %arg4[%c0_7, %c0_8] : memref<1x256xf32, #tpu.memory_space<vmem>>, vector<1x256xf32>
    %10 = vector.broadcast %9 : vector<1x256xf32> to vector<128x256xf32>
    %11 = arith.addf %8, %10 : vector<128x256xf32>
    %cst_9 = arith.constant 0.000000e+00 : f32
    %12 = vector.broadcast %cst_9 : f32 to vector<128x256xf32>
    %13 = arith.maximumf %11, %12 : vector<128x256xf32>
    %14 = arith.truncf %13 : vector<128x256xf32> to vector<128x256xbf16>
    %c0_10 = arith.constant 0 : index
    %c0_11 = arith.constant 0 : index
    %15 = vector.load %arg5[%c0_10, %c0_11] : memref<256x128xbf16, #tpu.memory_space<vmem>>, vector<256x128xbf16>
    %cst_12 = arith.constant dense<0.000000e+00> : vector<128x128xf32>
    %16 = tpu.matmul %14, %15, %cst_12 {dimension_numbers = #tpu.dot_dimension_numbers<[1], [0], [0], [1], [0, 0, 1, 1], [], []>} : vector<128x256xbf16>, vector<256x128xbf16>, vector<128x128xf32> -> vector<128x128xf32>
    %c0_13 = arith.constant 0 : index
    %c0_14 = arith.constant 0 : index
    %17 = vector.load %arg6[%c0_13, %c0_14] : memref<1x128xf32, #tpu.memory_space<vmem>>, vector<1x128xf32>
    %18 = vector.broadcast %17 : vector<1x128xf32> to vector<128x128xf32>
    %19 = arith.addf %16, %18 : vector<128x128xf32>
    %cst_15 = arith.constant dense<0.000000e+00> : vector<128xf32>
    %20 = vector.multi_reduction <add>, %19, %cst_15 [1] : vector<128x128xf32> to vector<128xf32>
    %21 = vector.shape_cast %20 : vector<128xf32> to vector<128x1xf32>
    %cst_16 = arith.constant 1.280000e+02 : f32
    %22 = vector.broadcast %cst_16 : f32 to vector<128x1xf32>
    %23 = arith.divf %21, %22 : vector<128x1xf32>
    %24 = vector.broadcast %23 : vector<128x1xf32> to vector<128x128xf32>
    %25 = arith.subf %19, %24 : vector<128x128xf32>
    %26 = arith.mulf %25, %25 : vector<128x128xf32>
    %cst_17 = arith.constant dense<0.000000e+00> : vector<128xf32>
    %27 = vector.multi_reduction <add>, %26, %cst_17 [1] : vector<128x128xf32> to vector<128xf32>
    %28 = vector.shape_cast %27 : vector<128xf32> to vector<128x1xf32>
    %cst_18 = arith.constant 1.280000e+02 : f32
    %29 = vector.broadcast %cst_18 : f32 to vector<128x1xf32>
    %30 = arith.divf %28, %29 : vector<128x1xf32>
    %31 = vector.broadcast %23 : vector<128x1xf32> to vector<128x128xf32>
    %32 = arith.subf %19, %31 : vector<128x128xf32>
    %cst_19 = arith.constant 9.99999974E-6 : f32
    %33 = vector.broadcast %cst_19 : f32 to vector<128x1xf32>
    %34 = arith.addf %30, %33 : vector<128x1xf32>
    %35 = math.rsqrt %34 : vector<128x1xf32>
    %36 = vector.broadcast %35 : vector<128x1xf32> to vector<128x128xf32>
    %37 = arith.mulf %32, %36 : vector<128x128xf32>
    %c0_20 = arith.constant 0 : index
    %c0_21 = arith.constant 0 : index
    %38 = vector.load %arg7[%c0_20, %c0_21] : memref<1x128xf32, #tpu.memory_space<vmem>>, vector<1x128xf32>
    %39 = vector.broadcast %38 : vector<1x128xf32> to vector<128x128xf32>
    %40 = arith.mulf %37, %39 : vector<128x128xf32>
    %c0_22 = arith.constant 0 : index
    %c0_23 = arith.constant 0 : index
    %41 = vector.load %arg8[%c0_22, %c0_23] : memref<1x128xf32, #tpu.memory_space<vmem>>, vector<1x128xf32>
    %42 = vector.broadcast %41 : vector<1x128xf32> to vector<128x128xf32>
    %43 = arith.addf %40, %42 : vector<128x128xf32>
    %c0_24 = arith.constant 0 : index
    %c0_25 = arith.constant 0 : index
    %44 = vector.load %arg9[%c0_24, %c0_25] : memref<128x128xf32, #tpu.memory_space<vmem>>, vector<128x128xf32>
    tpu.vector_store %arg9[%c0_24, %c0_25], %43 {strides = array<i32>} : memref<128x128xf32, #tpu.memory_space<vmem>>, vector<128x128xf32>,
    return
  }
  func.func @transform_0(%arg0: i32) -> (i32, i32) {
    %c0_i32 = arith.constant 0 : i32
    %c0_i32_0 = arith.constant 0 : i32
    return %arg0, %c0_i32 : i32, i32
  }
  func.func @transform_1(%arg0: i32) -> (i32, i32) {
    %c0_i32 = arith.constant 0 : i32
    %c0_i32_0 = arith.constant 0 : i32
    return %arg0, %c0_i32 : i32, i32
  }
  func.func @transform_2(%arg0: i32) -> (i32, i32) {
    %c0_i32 = arith.constant 0 : i32
    %c0_i32_0 = arith.constant 0 : i32
    %c0_i32_1 = arith.constant 0 : i32
    return %c0_i32, %c0_i32_0 : i32, i32
  }
  func.func @transform_3(%arg0: i32) -> (i32, i32) {
    %c0_i32 = arith.constant 0 : i32
    %c0_i32_0 = arith.constant 0 : i32
    %c0_i32_1 = arith.constant 0 : i32
    return %c0_i32, %c0_i32_0 : i32, i32
  }
  func.func @transform_4(%arg0: i32) -> (i32, i32) {
    %c0_i32 = arith.constant 0 : i32
    %c0_i32_0 = arith.constant 0 : i32
    %c0_i32_1 = arith.constant 0 : i32
    return %c0_i32, %c0_i32_0 : i32, i32
  }
  func.func @transform_5(%arg0: i32) -> (i32, i32) {
    %c0_i32 = arith.constant 0 : i32
    %c0_i32_0 = arith.constant 0 : i32
    %c0_i32_1 = arith.constant 0 : i32
    return %c0_i32, %c0_i32_0 : i32, i32
  }
  func.func @transform_6(%arg0: i32) -> (i32, i32) {
    %c0_i32 = arith.constant 0 : i32
    %c0_i32_0 = arith.constant 0 : i32
    %c0_i32_1 = arith.constant 0 : i32
    return %c0_i32, %c0_i32_0 : i32, i32
  }
  func.func @transform_7(%arg0: i32) -> (i32, i32) {
    %c0_i32 = arith.constant 0 : i32
    %c0_i32_0 = arith.constant 0 : i32
    %c0_i32_1 = arith.constant 0 : i32
    return %c0_i32, %c0_i32_0 : i32, i32
  }
  func.func @transform_8(%arg0: i32) -> (i32, i32) {
    %c0_i32 = arith.constant 0 : i32
    %c0_i32_0 = arith.constant 0 : i32
    return %arg0, %c0_i32 : i32, i32
  }
}

</mosaic_0001>

<llo_original>
// kernel: _cat_nonlin_pallas.1
$region0: #{_cat_nonlin_pallas.1}
  #allocation0 [shape = 'u32[]', space=smem, size = 0x4, offset = 0x4, fixed_abs, tag = 'smem constant byte address 0x4 - core index']
  #allocation1 [shape = 'u32[144,128]{1,0:T(1,128)}', space=vmem, size = 0x12000, scoped, tag = 'internal scratch']
  %s0 = inlined_call_operand.hbm [shape: f32[512,128], index: 0, kind: input, shape index: {}]
  %s1 = inlined_call_operand.hbm [shape: f32[512,128], index: 1, kind: input, shape index: {}]
  %s2 = inlined_call_operand.hbm [shape: bf16[256,256], index: 2, kind: input, shape index: {}]
  %s3 = inlined_call_operand.vmem [shape: f32[1,256], index: 3, kind: input, shape index: {}]
  %s4 = inlined_call_operand.hbm [shape: bf16[256,128], index: 4, kind: input, shape index: {}]
  %s5 = inlined_call_operand.vmem [shape: f32[1,128], index: 5, kind: input, shape index: {}]
  %s6 = inlined_call_operand.vmem [shape: f32[1,128], index: 6, kind: input, shape index: {}]
  %s7 = inlined_call_operand.vmem [shape: f32[1,128], index: 7, kind: input, shape index: {}]
  %s8 = inlined_call_operand.hbm [shape: f32[512,128], index: 8, kind: output, shape index: {}]
  %s9 = sld [smem:[#allocation0]]
  $region81: #{_cat_nonlin_pallas.1} parent=0
    _
  %s11 = ssub.s32 1, %s9
  %s12 = scalar_select 0, %s11, %s9
  $region1: #{_cat_nonlin_pallas.1} parent=0
    #allocation2 [shape = 'u8[131072]{0}', space=vmem, size = 0x20000, scoped, tag = 'input window, operand 0']
    #allocation3 [shape = 's32[2]{0}', space=sflag, size = 0x8, scoped, tag = 'scoped memory for _cat_nonlin_pallas.1']
    #allocation4 [shape = 's32[2]{0}', space=sflag, size = 0x8, scoped, tag = 'scoped memory for _cat_nonlin_pallas.1']
    #allocation5 [shape = 'u8[131072]{0}', space=vmem, size = 0x20000, scoped, tag = 'input window, operand 1']
    #allocation6 [shape = 's32[2]{0}', space=sflag, size = 0x8, scoped, tag = 'scoped memory for _cat_nonlin_pallas.1']
    #allocation7 [shape = 'u8[131072]{0}', space=vmem, size = 0x20000, scoped, tag = 'input window, operand 2, single buffered']
    #allocation8 [shape = 'u8[65536]{0}', space=vmem, size = 0x10000, scoped, tag = 'input window, operand 4, single buffered']
    #allocation9 [shape = 's32[1]{0}', space=sflag, size = 0x4, scoped, tag = 'scoped memory for _cat_nonlin_pallas.1']
    #allocation10 [shape = 'u8[131072]{0}', space=vmem, size = 0x20000, scoped, tag = 'output window, operand 0']
    %13 = vsyncpa [#allocation3], 0
    %s14 = scalar_lea.sflag [#allocation3], 1
    %15 = vsyncpa %s14, 0
    %16 = vsyncpa [#allocation6], 0
    %s17 = scalar_lea.sflag [#allocation6], 1
    %18 = vsyncpa %s17, 0
    %19 = vsyncpa [#allocation9], 0
    %20 = vsyncpa [#allocation4], 0
    %s21 = scalar_lea.sflag [#allocation4], 1
    %22 = vsyncpa %s21, 0
    loop: start=0, step=1, limit=6
    $region2: #{_cat_nonlin_pallas.1} parent=1 // loop_pre_header
      _
    $region3: #{_cat_nonlin_pallas.1} parent=1 // loop_header
      %s24 = sphi 0, %s28
      %p25 = scmp.ge.s32.totalorder %s24, 6
      %s34 = sphi 0, %s36
      %s37 = sphi 0, %s34
      %s38 = sphi 0, %s37
      %s54 = sphi 0, %s38
      %s60 = sphi 0, %s62
      %s63 = sphi 0, %s60
      %s64 = sphi 0, %s63
      %s80 = sphi 0, %s64
      %s84 = sphi 0, %s84
      %s86 = sphi 0, %s84
      %s87 = sphi 0, %s86
      %s101 = sphi 0, %s87
      %s105 = sphi 0, %s105
      %s107 = sphi 0, %s105
      %s108 = sphi 0, %s107
      %s122 = sphi 0, %s108
      %s126 = sphi 0, %s126
      %s128 = sphi 0, %s126
      %s129 = sphi 0, %s128
      %s143 = sphi 0, %s129
      %s147 = sphi 0, %s147
      %s149 = sphi 0, %s147
      %s150 = sphi 0, %s149
      %s164 = sphi 0, %s150
      %s168 = sphi 0, %s168
      %s170 = sphi 0, %s168
      %s171 = sphi 0, %s170
      %s185 = sphi 0, %s171
      %s189 = sphi 0, %s189
      %s191 = sphi 0, %s189
      %s192 = sphi 0, %s191
      %s206 = sphi 0, %s192
      %s212 = sphi 0, %s214
      %s215 = sphi 0, %s212
      %s216 = sphi 0, %s215
      %s232 = sphi 0, %s216
    $region4: #{_cat_nonlin_pallas.1} parent=1 // loop_header_branch
      %27 = sbr.rel (%p25) target = $region8
    $region5: #{_cat_nonlin_pallas.1} parent=1 // loop_body
      %s29 = ssub.s32 %s24, 1
      %s30 = ssub.s32 %s24, 2
      %s31 = sadd.s32 %s24, 1
      %s32 = ssub.s32 %s24, %s31
      %p33 = scmp.eq.s32.totalorder %s32, 0
      %s35 = sadd.s32 %s34, 1
      %s36 = scalar_select %p33, %s34, %s35
      %p39 = pneg %p33
      %p40 = scmp.eq.s32.totalorder %s24, 3
      %p41 = por %p39, %p40
      %p42 = scmp.ne.s32.totalorder %s34, %s37
      %p43 = scmp.eq.s32.totalorder %s24, 0
      %p44 = por %p42, %p43
      %p45 = scmp.ne.s32.totalorder %s34, %s37
      %p46 = scmp.eq.s32.totalorder %s29, 3
      %p47 = por %p45, %p46
      %p48 = scmp.ne.s32.totalorder %s37, %s38
      %p49 = scmp.eq.s32.totalorder %s29, 0
      %p50 = por %p48, %p49
      %p51 = scmp.ne.s32.totalorder %s37, %s38
      %p52 = scmp.eq.s32.totalorder %s30, 3
      %p53 = por %p51, %p52
      %p55 = scmp.ne.s32.totalorder %s38, %s54
      %p56 = scmp.eq.s32.totalorder %s30, 0
      %p57 = por %p55, %p56
      %s58 = ssub.s32 %s24, %s31
      %p59 = scmp.eq.s32.totalorder %s58, 0
      %s61 = sadd.s32 %s60, 1
      %s62 = scalar_select %p59, %s60, %s61
      %p65 = pneg %p59
      %p66 = scmp.eq.s32.totalorder %s24, 3
      %p67 = por %p65, %p66
      %p68 = scmp.ne.s32.totalorder %s60, %s63
      %p69 = scmp.eq.s32.totalorder %s24, 0
      %p70 = por %p68, %p69
      %p71 = scmp.ne.s32.totalorder %s60, %s63
      %p72 = scmp.eq.s32.totalorder %s29, 3
      %p73 = por %p71, %p72
      %p74 = scmp.ne.s32.totalorder %s63, %s64
      %p75 = scmp.eq.s32.totalorder %s29, 0
      %p76 = por %p74, %p75
      %p77 = scmp.ne.s32.totalorder %s63, %s64
      %p78 = scmp.eq.s32.totalorder %s30, 3
      %p79 = por %p77, %p78
      %p81 = scmp.ne.s32.totalorder %s64, %s80
      %p82 = scmp.eq.s32.totalorder %s30, 0
      %p83 = por %p81, %p82
      %s85 = sadd.s32 %s84, 1
      %p88 = scmp.eq.s32.totalorder %s24, 3
      %p89 = scmp.ne.s32.totalorder %s84, %s86
      %p90 = scmp.eq.s32.totalorder %s24, 0
      %p91 = por %p89, %p90
      %p92 = scmp.ne.s32.totalorder %s84, %s86
      %p93 = scmp.eq.s32.totalorder %s29, 3
      %p94 = por %p92, %p93
      %p95 = scmp.ne.s32.totalorder %s86, %s87
      %p96 = scmp.eq.s32.totalorder %s29, 0
      %p97 = por %p95, %p96
      %p98 = scmp.ne.s32.totalorder %s86, %s87
      %p99 = scmp.eq.s32.totalorder %s30, 3
      %p100 = por %p98, %p99
      %p102 = scmp.ne.s32.totalorder %s87, %s101
      %p103 = scmp.eq.s32.totalorder %s30, 0
      %p104 = por %p102, %p103
      %s106 = sadd.s32 %s105, 1
      %p109 = scmp.eq.s32.totalorder %s24, 3
      %p110 = scmp.ne.s32.totalorder %s105, %s107
      %p111 = scmp.eq.s32.totalorder %s24, 0
      %p112 = por %p110, %p111
      %p113 = scmp.ne.s32.totalorder %s105, %s107
      %p114 = scmp.eq.s32.totalorder %s29, 3
      %p115 = por %p113, %p114
      %p116 = scmp.ne.s32.totalorder %s107, %s108
      %p117 = scmp.eq.s32.totalorder %s29, 0
      %p118 = por %p116, %p117
      %p119 = scmp.ne.s32.totalorder %s107, %s108
      %p120 = scmp.eq.s32.totalorder %s30, 3
      %p121 = por %p119, %p120
      %p123 = scmp.ne.s32.totalorder %s108, %s122
      %p124 = scmp.eq.s32.totalorder %s30, 0
      %p125 = por %p123, %p124
      %s127 = sadd.s32 %s126, 1
      %p130 = scmp.eq.s32.totalorder %s24, 3
      %p131 = scmp.ne.s32.totalorder %s126, %s128
      %p132 = scmp.eq.s32.totalorder %s24, 0
      %p133 = por %p131, %p132
      %p134 = scmp.ne.s32.totalorder %s126, %s128
      %p135 = scmp.eq.s32.totalorder %s29, 3
      %p136 = por %p134, %p135
      %p137 = scmp.ne.s32.totalorder %s128, %s129
      %p138 = scmp.eq.s32.totalorder %s29, 0
      %p139 = por %p137, %p138
      %p140 = scmp.ne.s32.totalorder %s128, %s129
      %p141 = scmp.eq.s32.totalorder %s30, 3
      %p142 = por %p140, %p141
      %p144 = scmp.ne.s32.totalorder %s129, %s143
      %p145 = scmp.eq.s32.totalorder %s30, 0
      %p146 = por %p144, %p145
      %s148 = sadd.s32 %s147, 1
      %p151 = scmp.eq.s32.totalorder %s24, 3
      %p152 = scmp.ne.s32.totalorder %s147, %s149
      %p153 = scmp.eq.s32.totalorder %s24, 0
      %p154 = por %p152, %p153
      %p155 = scmp.ne.s32.totalorder %s147, %s149
      %p156 = scmp.eq.s32.totalorder %s29, 3
      %p157 = por %p155, %p156
      %p158 = scmp.ne.s32.totalorder %s149, %s150
      %p159 = scmp.eq.s32.totalorder %s29, 0
      %p160 = por %p158, %p159
      %p161 = scmp.ne.s32.totalorder %s149, %s150
      %p162 = scmp.eq.s32.totalorder %s30, 3
      %p163 = por %p161, %p162
      %p165 = scmp.ne.s32.totalorder %s150, %s164
      %p166 = scmp.eq.s32.totalorder %s30, 0
      %p167 = por %p165, %p166
      %s169 = sadd.s32 %s168, 1
      %p172 = scmp.eq.s32.totalorder %s24, 3
      %p173 = scmp.ne.s32.totalorder %s168, %s170
      %p174 = scmp.eq.s32.totalorder %s24, 0
      %p175 = por %p173, %p174
      %p176 = scmp.ne.s32.totalorder %s168, %s170
      %p177 = scmp.eq.s32.totalorder %s29, 3
      %p178 = por %p176, %p177
      %p179 = scmp.ne.s32.totalorder %s170, %s171
      %p180 = scmp.eq.s32.totalorder %s29, 0
      %p181 = por %p179, %p180
      %p182 = scmp.ne.s32.totalorder %s170, %s171
      %p183 = scmp.eq.s32.totalorder %s30, 3
      %p184 = por %p182, %p183
      %p186 = scmp.ne.s32.totalorder %s171, %s185
      %p187 = scmp.eq.s32.totalorder %s30, 0
      %p188 = por %p186, %p187
      %s190 = sadd.s32 %s189, 1
      %p193 = scmp.eq.s32.totalorder %s24, 3
      %p194 = scmp.ne.s32.totalorder %s189, %s191
      %p195 = scmp.eq.s32.totalorder %s24, 0
      %p196 = por %p194, %p195
      %p197 = scmp.ne.s32.totalorder %s189, %s191
      %p198 = scmp.eq.s32.totalorder %s29, 3
      %p199 = por %p197, %p198
      %p200 = scmp.ne.s32.totalorder %s191, %s192
      %p201 = scmp.eq.s32.totalorder %s29, 0
      %p202 = por %p200, %p201
      %p203 = scmp.ne.s32.totalorder %s191, %s192
      %p204 = scmp.eq.s32.totalorder %s30, 3
      %p205 = por %p203, %p204
      %p207 = scmp.ne.s32.totalorder %s192, %s206
      %p208 = scmp.eq.s32.totalorder %s30, 0
      %p209 = por %p207, %p208
      %s210 = ssub.s32 %s24, %s31
      %p211 = scmp.eq.s32.totalorder %s210, 0
      %s213 = sadd.s32 %s212, 1
      %s214 = scalar_select %p211, %s212, %s213
      %p217 = pneg %p211
      %p218 = scmp.eq.s32.totalorder %s24, 3
      %p219 = por %p217, %p218
      %p220 = scmp.ne.s32.totalorder %s212, %s215
      %p221 = scmp.eq.s32.totalorder %s24, 0
      %p222 = por %p220, %p221
      %p223 = scmp.ne.s32.totalorder %s212, %s215
      %p224 = scmp.eq.s32.totalorder %s29, 3
      %p225 = por %p223, %p224
      %p226 = scmp.ne.s32.totalorder %s215, %s216
      %p227 = scmp.eq.s32.totalorder %s29, 0
      %p228 = por %p226, %p227
      %p229 = scmp.ne.s32.totalorder %s215, %s216
      %p230 = scmp.eq.s32.totalorder %s30, 3
      %p231 = por %p229, %p230
      %p233 = scmp.ne.s32.totalorder %s216, %s232
      %p234 = scmp.eq.s32.totalorder %s30, 0
      %p235 = por %p233, %p234
      %p236 = scmp.le.s32.totalorder 1, %s24
      %p237 = scmp.lt.s32.totalorder %s24, 5
      %p238 = pnand %p236, %p237
      %p239 = pneg %p238
      // Predicated region
      $region9: #{_cat_nonlin_pallas.1} parent=5 // pred_check
        _
      $region10: #{_cat_nonlin_pallas.1} parent=5 // pred_check_branch
        %241 = sbr.rel (%p238) target = $region12
      $region11: #{_cat_nonlin_pallas.1} parent=5 // pred_region
        %s242 = ssub.s32 %s24, 1
        // Predicated region
        $region13: #{_cat_nonlin_pallas.1} parent=11 // pred_check
          %p243 = pneg %p97
        $region14: #{_cat_nonlin_pallas.1} parent=11 // pred_check_branch
          %245 = sbr.rel (%p243) target = $region16
        $region15: #{_cat_nonlin_pallas.1} parent=11 // pred_region
          %s247 = ssub.s32 4096, 4096
          %248 = vsyncadd [#allocation6], %s247
          %s249 = sshll.u32 [#allocation7], 4
          %s250 = int_to_ptr.vmem [resolvable:$true] %s249
          %255 = dma.hbm_to_vmem [thread:$0]  %s2, 4096, %s250, [#allocation6], 128, 128, 8
        $region16: #{_cat_nonlin_pallas.1} parent=11 // pred_fallthru
          _
        // Predicated region
        $region17: #{_cat_nonlin_pallas.1} parent=11 // pred_check
          %p256 = pneg %p118
        $region18: #{_cat_nonlin_pallas.1} parent=11 // pred_check_branch
          %258 = sbr.rel (%p256) target = $region20
        $region19: #{_cat_nonlin_pallas.1} parent=11 // pred_region
          _
        $region20: #{_cat_nonlin_pallas.1} parent=11 // pred_fallthru
          _
        // Predicated region
        $region21: #{_cat_nonlin_pallas.1} parent=11 // pred_check
          %p259 = pneg %p139
        $region22: #{_cat_nonlin_pallas.1} parent=11 // pred_check_branch
          %261 = sbr.rel (%p259) target = $region24
        $region23: #{_cat_nonlin_pallas.1} parent=11 // pred_region
          %s263 = ssub.s32 2048, 2048
          %264 = vsyncadd [#allocation9], %s263
          %s265 = sshll.u32 [#allocation8], 4
          %s266 = int_to_ptr.vmem [resolvable:$true] %s265
          %271 = dma.hbm_to_vmem [thread:$0]  %s4, 2048, %s266, [#allocation9], 64, 64, 4
        $region24: #{_cat_nonlin_pallas.1} parent=11 // pred_fallthru
          _
        // Predicated region
        $region25: #{_cat_nonlin_pallas.1} parent=11 // pred_check
          %p272 = pneg %p160
        $region26: #{_cat_nonlin_pallas.1} parent=11 // pred_check_branch
          %274 = sbr.rel (%p272) target = $region28
        $region27: #{_cat_nonlin_pallas.1} parent=11 // pred_region
          _
        $region28: #{_cat_nonlin_pallas.1} parent=11 // pred_fallthru
          _
        // Predicated region
        $region29: #{_cat_nonlin_pallas.1} parent=11 // pred_check
          %p275 = pneg %p181
        $region30: #{_cat_nonlin_pallas.1} parent=11 // pred_check_branch
          %277 = sbr.rel (%p275) target = $region32
        $region31: #{_cat_nonlin_pallas.1} parent=11 // pred_region
          _
        $region32: #{_cat_nonlin_pallas.1} parent=11 // pred_fallthru
          _
        // Predicated region
        $region33: #{_cat_nonlin_pallas.1} parent=11 // pred_check
          %p278 = pneg %p202
        $region34: #{_cat_nonlin_pallas.1} parent=11 // pred_check_branch
          %280 = sbr.rel (%p278) target = $region36
        $region35: #{_cat_nonlin_pallas.1} parent=11 // pred_region
          _
        $region36: #{_cat_nonlin_pallas.1} parent=11 // pred_fallthru
          _
      $region12: #{_cat_nonlin_pallas.1} parent=5 // pred_fallthru
        _
      %p281 = scmp.lt.s32.totalorder %s24, 4
      // Predicated region
      $region37: #{_cat_nonlin_pallas.1} parent=5 // pred_check
        %p282 = pneg %p281
      $region38: #{_cat_nonlin_pallas.1} parent=5 // pred_check_branch
        %284 = sbr.rel (%p282) target = $region40
      $region39: #{_cat_nonlin_pallas.1} parent=5 // pred_region
        // Predicated region
        $region41: #{_cat_nonlin_pallas.1} parent=39 // pred_check
          %p285 = pneg %p44
        $region42: #{_cat_nonlin_pallas.1} parent=39 // pred_check_branch
          %287 = sbr.rel (%p285) target = $region44
        $region43: #{_cat_nonlin_pallas.1} parent=39 // pred_region
          %s288 = sand.u32 %s34, 1
          %s289 = scalar_lea.sflag [#allocation3], %s288
          %s290 = sand.u32 %s34, 1
          %s291 = smul.addr %s290, 128
          %s292 = scalar_lea.vmem [#allocation2], %s291
          %s293 = smul.u32 16, %s24
          %s295 = ssub.s32 2048, 2048
          %296 = vsyncadd %s289, %s295
          %s297 = smul.addr %s293, 128
          %s298 = scalar_lea.hbm %s0, %s297
          %s299 = sshll.u32 %s292, 4
          %s300 = int_to_ptr.vmem [resolvable:$true] %s299
          %305 = dma.hbm_to_vmem [thread:$0]  %s298, 2048, %s300, %s289, 128, 128, 8
        $region44: #{_cat_nonlin_pallas.1} parent=39 // pred_fallthru
          _
        // Predicated region
        $region45: #{_cat_nonlin_pallas.1} parent=39 // pred_check
          %p306 = pneg %p70
        $region46: #{_cat_nonlin_pallas.1} parent=39 // pred_check_branch
          %308 = sbr.rel (%p306) target = $region48
        $region47: #{_cat_nonlin_pallas.1} parent=39 // pred_region
          %s309 = sand.u32 %s24, 1
          %s310 = scalar_lea.sflag [#allocation6], %s309
          %s311 = sand.u32 %s60, 1
          %s312 = smul.addr %s311, 128
          %s313 = scalar_lea.vmem [#allocation5], %s312
          %s314 = smul.u32 16, %s24
          %s316 = ssub.s32 2048, 2048
          %317 = vsyncadd %s310, %s316
          %s318 = smul.addr %s314, 128
          %s319 = scalar_lea.hbm %s1, %s318
          %s320 = sshll.u32 %s313, 4
          %s321 = int_to_ptr.vmem [resolvable:$true] %s320
          %326 = dma.hbm_to_vmem [thread:$0]  %s319, 2048, %s321, %s310, 128, 128, 8
        $region48: #{_cat_nonlin_pallas.1} parent=39 // pred_fallthru
          _
      $region40: #{_cat_nonlin_pallas.1} parent=5 // pred_fallthru
        _
      %p327 = scmp.le.s32.totalorder 1, %s24
      %p328 = scmp.lt.s32.totalorder %s24, 5
      %p329 = pnand %p327, %p328
      %p330 = pneg %p329
      // Predicated region
      $region49: #{_cat_nonlin_pallas.1} parent=5 // pred_check
        _
      $region50: #{_cat_nonlin_pallas.1} parent=5 // pred_check_branch
        %332 = sbr.rel (%p329) target = $region52
      $region51: #{_cat_nonlin_pallas.1} parent=5 // pred_region
        %s333 = ssub.s32 %s24, 1
        %s334 = sand.u32 %s37, 1
        %s335 = scalar_lea.sflag [#allocation3], %s334
        %s336 = sand.u32 %s37, 1
        %s337 = smul.addr %s336, 128
        %s338 = scalar_lea.vmem [#allocation2], %s337
        // Predicated region
        $region53: #{_cat_nonlin_pallas.1} parent=51 // pred_check
          %p339 = pneg %p50
        $region54: #{_cat_nonlin_pallas.1} parent=51 // pred_check_branch
          %341 = sbr.rel (%p339) target = $region56
        $region55: #{_cat_nonlin_pallas.1} parent=51 // pred_region
          %342 = dma.done %s335, 2048
        $region56: #{_cat_nonlin_pallas.1} parent=51 // pred_fallthru
          _
        %s343 = sand.u32 %s29, 1
        %s344 = scalar_lea.sflag [#allocation6], %s343
        %s345 = sand.u32 %s63, 1
        %s346 = smul.addr %s345, 128
        %s347 = scalar_lea.vmem [#allocation5], %s346
        // Predicated region
        $region57: #{_cat_nonlin_pallas.1} parent=51 // pred_check
          %p348 = pneg %p76
        $region58: #{_cat_nonlin_pallas.1} parent=51 // pred_check_branch
          %350 = sbr.rel (%p348) target = $region60
        $region59: #{_cat_nonlin_pallas.1} parent=51 // pred_region
          %351 = dma.done %s344, 2048
        $region60: #{_cat_nonlin_pallas.1} parent=51 // pred_fallthru
          _
        // Predicated region
        $region61: #{_cat_nonlin_pallas.1} parent=51 // pred_check
          %p352 = pneg %p97
        $region62: #{_cat_nonlin_pallas.1} parent=51 // pred_check_branch
          %354 = sbr.rel (%p352) target = $region64
        $region63: #{_cat_nonlin_pallas.1} parent=51 // pred_region
          %355 = dma.done [#allocation6], 4096
        $region64: #{_cat_nonlin_pallas.1} parent=51 // pred_fallthru
          _
        // Predicated region
        $region65: #{_cat_nonlin_pallas.1} parent=51 // pred_check
          %p356 = pneg %p139
        $region66: #{_cat_nonlin_pallas.1} parent=51 // pred_check_branch
          %358 = sbr.rel (%p356) target = $region68
        $region67: #{_cat_nonlin_pallas.1} parent=51 // pred_region
          %359 = dma.done [#allocation9], 2048
        $region68: #{_cat_nonlin_pallas.1} parent=51 // pred_fallthru
          _
        %s360 = sand.u32 %s37, 1
        %s361 = scalar_lea.sflag [#allocation3], %s360
        %s362 = sand.u32 %s37, 1
        %s363 = smul.addr %s362, 128
        %s364 = scalar_lea.vmem [#allocation2], %s363
        %p365 = pneg %p50
        %p366 = pneg %p47
        %s367 = sand.u32 %s29, 1
        %s368 = scalar_lea.sflag [#allocation6], %s367
        %s369 = sand.u32 %s63, 1
        %s370 = smul.addr %s369, 128
        %s371 = scalar_lea.vmem [#allocation5], %s370
        %p372 = pneg %p76
        %p373 = pneg %p73
        %p374 = pneg %p97
        %p375 = pneg %p94
        %p376 = pneg %p118
        %p377 = pneg %p115
        %p378 = pneg %p139
        %p379 = pneg %p136
        %p380 = pneg %p160
        %p381 = pneg %p157
        %p382 = pneg %p181
        %p383 = pneg %p178
        %p384 = pneg %p202
        %p385 = pneg %p199
        %p386 = pneg %p228
        %p387 = pneg %p225
        %s388 = sand.u32 %s215, 1
        %s389 = scalar_lea.sflag [#allocation4], %s388
        %s390 = sand.u32 %s215, 1
        %s391 = smul.addr %s390, 128
        %s392 = scalar_lea.vmem [#allocation10], %s391
        %s393 = smul.u32 16, %s29
        %s394 = smul.u32 16, %s29
        %s395 = smul.u32 16, %s29
        %v397 = vld [vmem:[%s338] sm:$0xff]
        %v398 = vld [vmem:[%s338 + $0x8] sm:$0xff]
        %v399 = vld [vmem:[%s338 + $0x10] sm:$0xff]
        %v400 = vld [vmem:[%s338 + $0x18] sm:$0xff]
        %v401 = vld [vmem:[%s338 + $0x20] sm:$0xff]
        %v402 = vld [vmem:[%s338 + $0x28] sm:$0xff]
        %v403 = vld [vmem:[%s338 + $0x30] sm:$0xff]
        %v404 = vld [vmem:[%s338 + $0x38] sm:$0xff]
        %v405 = vld [vmem:[%s338 + $0x40] sm:$0xff]
        %v406 = vld [vmem:[%s338 + $0x48] sm:$0xff]
        %v407 = vld [vmem:[%s338 + $0x50] sm:$0xff]
        %v408 = vld [vmem:[%s338 + $0x58] sm:$0xff]
        %v409 = vld [vmem:[%s338 + $0x60] sm:$0xff]
        %v410 = vld [vmem:[%s338 + $0x68] sm:$0xff]
        %v411 = vld [vmem:[%s338 + $0x70] sm:$0xff]
        %v412 = vld [vmem:[%s338 + $0x78] sm:$0xff]
        %v413 = vpack.c.bf16 %v398, %v397
        %v414 = vpack.c.bf16 %v400, %v399
        %v415 = vpack.c.bf16 %v402, %v401
        %v416 = vpack.c.bf16 %v404, %v403
        %v417 = vpack.c.bf16 %v406, %v405
        %v418 = vpack.c.bf16 %v408, %v407
        %v419 = vpack.c.bf16 %v410, %v409
        %v420 = vpack.c.bf16 %v412, %v411
        %v421 = vld [vmem:[#allocation7] sm:$0xff]
        %v422 = vld [vmem:[#allocation7 + $0x8] sm:$0xff]
        %v423 = vld [vmem:[#allocation7 + $0x10] sm:$0xff]
        %v424 = vld [vmem:[#allocation7 + $0x18] sm:$0xff]
        %v425 = vld [vmem:[#allocation7 + $0x20] sm:$0xff]
        %v426 = vld [vmem:[#allocation7 + $0x28] sm:$0xff]
        %v427 = vld [vmem:[#allocation7 + $0x30] sm:$0xff]
        %v428 = vld [vmem:[#allocation7 + $0x38] sm:$0xff]
        %v429 = vld [vmem:[#allocation7 + $0x40] sm:$0xff]
        %v430 = vld [vmem:[#allocation7 + $0x48] sm:$0xff]
        %v431 = vld [vmem:[#allocation7 + $0x50] sm:$0xff]
        %v432 = vld [vmem:[#allocation7 + $0x58] sm:$0xff]
        %v433 = vld [vmem:[#allocation7 + $0x60] sm:$0xff]
        %v434 = vld [vmem:[#allocation7 + $0x68] sm:$0xff]
        %v435 = vld [vmem:[#allocation7 + $0x70] sm:$0xff]
        %v436 = vld [vmem:[#allocation7 + $0x78] sm:$0xff]
        %v437 = vld [vmem:[%s347] sm:$0xff]
        %v438 = vld [vmem:[%s347 + $0x8] sm:$0xff]
        %v439 = vld [vmem:[%s347 + $0x10] sm:$0xff]
        %v440 = vld [vmem:[%s347 + $0x18] sm:$0xff]
        %v441 = vld [vmem:[%s347 + $0x20] sm:$0xff]
        %v442 = vld [vmem:[%s347 + $0x28] sm:$0xff]
        %v443 = vld [vmem:[%s347 + $0x30] sm:$0xff]
        %v444 = vld [vmem:[%s347 + $0x38] sm:$0xff]
        %v445 = vld [vmem:[%s347 + $0x40] sm:$0xff]
        %v446 = vld [vmem:[%s347 + $0x48] sm:$0xff]
        %v447 = vld [vmem:[%s347 + $0x50] sm:$0xff]
        %v448 = vld [vmem:[%s347 + $0x58] sm:$0xff]
        %v449 = vld [vmem:[%s347 + $0x60] sm:$0xff]
        %v450 = vld [vmem:[%s347 + $0x68] sm:$0xff]
        %v451 = vld [vmem:[%s347 + $0x70] sm:$0xff]
        %v452 = vld [vmem:[%s347 + $0x78] sm:$0xff]
        %v453 = vpack.c.bf16 %v438, %v437
        %v454 = vpack.c.bf16 %v440, %v439
        %v455 = vpack.c.bf16 %v442, %v441
        %v456 = vpack.c.bf16 %v444, %v443
        %v457 = vpack.c.bf16 %v446, %v445
        %v458 = vpack.c.bf16 %v448, %v447
        %v459 = vpack.c.bf16 %v450, %v449
        %v460 = vpack.c.bf16 %v452, %v451
        %v461 = vld [vmem:[#allocation7 + $0x80] sm:$0xff]
        %v462 = vld [vmem:[#allocation7 + $0x88] sm:$0xff]
        %v463 = vld [vmem:[#allocation7 + $0x90] sm:$0xff]
        %v464 = vld [vmem:[#allocation7 + $0x98] sm:$0xff]
        %v465 = vld [vmem:[#allocation7 + $0xa0] sm:$0xff]
        %v466 = vld [vmem:[#allocation7 + $0xa8] sm:$0xff]
        %v467 = vld [vmem:[#allocation7 + $0xb0] sm:$0xff]
        %v468 = vld [vmem:[#allocation7 + $0xb8] sm:$0xff]
        %v469 = vld [vmem:[#allocation7 + $0xc0] sm:$0xff]
        %v470 = vld [vmem:[#allocation7 + $0xc8] sm:$0xff]
        %v471 = vld [vmem:[#allocation7 + $0xd0] sm:$0xff]
        %v472 = vld [vmem:[#allocation7 + $0xd8] sm:$0xff]
        %v473 = vld [vmem:[#allocation7 + $0xe0] sm:$0xff]
        %v474 = vld [vmem:[#allocation7 + $0xe8] sm:$0xff]
        %v475 = vld [vmem:[#allocation7 + $0xf0] sm:$0xff]
        %v476 = vld [vmem:[#allocation7 + $0xf8] sm:$0xff]
        %v493 = vunpack.c.l.b16 %v461
        %v494 = vunpack.c.h.b16 %v461
        %v495 = vunpack.c.l.b16 %v462
        %v496 = vunpack.c.h.b16 %v462
        %v497 = vunpack.c.l.b16 %v463
        %v498 = vunpack.c.h.b16 %v463
        %v499 = vunpack.c.l.b16 %v464
        %v500 = vunpack.c.h.b16 %v464
        %v501 = vunpack.c.l.b16 %v465
        %v502 = vunpack.c.h.b16 %v465
        %v503 = vunpack.c.l.b16 %v466
        %v504 = vunpack.c.h.b16 %v466
        %v505 = vunpack.c.l.b16 %v467
        %v506 = vunpack.c.h.b16 %v467
        %v507 = vunpack.c.l.b16 %v468
        %v508 = vunpack.c.h.b16 %v468
        %v509 = vunpack.c.l.b16 %v469
        %v510 = vunpack.c.h.b16 %v469
        %v511 = vunpack.c.l.b16 %v470
        %v512 = vunpack.c.h.b16 %v470
        %v513 = vunpack.c.l.b16 %v471
        %v514 = vunpack.c.h.b16 %v471
        %v515 = vunpack.c.l.b16 %v472
        %v516 = vunpack.c.h.b16 %v472
        %v517 = vunpack.c.l.b16 %v473
        %v518 = vunpack.c.h.b16 %v473
        %v519 = vunpack.c.l.b16 %v474
        %v520 = vunpack.c.h.b16 %v474
        %v521 = vunpack.c.l.b16 %v475
        %v522 = vunpack.c.h.b16 %v475
        %v523 = vunpack.c.l.b16 %v476
        %v524 = vunpack.c.h.b16 %v476
        %v525 = vpack.c.b16 %v495, %v493
        %v526 = vpack.c.b16 %v496, %v494
        %v527 = vpack.c.b16 %v499, %v497
        %v528 = vpack.c.b16 %v500, %v498
        %v529 = vpack.c.b16 %v503, %v501
        %v530 = vpack.c.b16 %v504, %v502
        %v531 = vpack.c.b16 %v507, %v505
        %v532 = vpack.c.b16 %v508, %v506
        %v533 = vpack.c.b16 %v511, %v509
        %v534 = vpack.c.b16 %v512, %v510
        %v535 = vpack.c.b16 %v515, %v513
        %v536 = vpack.c.b16 %v516, %v514
        %v537 = vpack.c.b16 %v519, %v517
        %v538 = vpack.c.b16 %v520, %v518
        %v539 = vpack.c.b16 %v523, %v521
        %v540 = vpack.c.b16 %v524, %v522
        %557 = vmatprep.subr.bf16.mxu0 %v540
        %558 = vmatpush1.bf16.msra.mxu0 %v539
        %559 = vmatprep.subr.bf16.mxu0 %v538
        %560 = vmatpush1.bf16.msra.mxu0 %v537
        %561 = vmatprep.subr.bf16.mxu0 %v536
        %562 = vmatpush1.bf16.msra.mxu0 %v535
        %563 = vmatprep.subr.bf16.mxu0 %v534
        %564 = vmatpush1.bf16.msra.mxu0 %v533
        %565 = vmatprep.subr.bf16.mxu0 %v532
        %566 = vmatpush1.bf16.msra.mxu0 %v531
        %567 = vmatprep.subr.bf16.mxu0 %v530
        %568 = vmatpush1.bf16.msra.mxu0 %v529
        %569 = vmatprep.subr.bf16.mxu0 %v528
        %570 = vmatpush1.bf16.msra.mxu0 %v527
        %571 = vmatprep.subr.bf16.mxu0 %v526
        %572 = vmatpush1.bf16.msra.mxu0 %v525
        %573 = vmatprep.subr.bf16.mxu0 0
        %574 = vmatpush2.bf16.msra.mxu0 0
        %575 = vmatprep.subr.bf16.mxu0 0
        %576 = vmatpush2.bf16.msra.mxu0 0
        %577 = vmatprep.subr.bf16.mxu0 0
        %578 = vmatpush2.bf16.msra.mxu0 0
        %579 = vmatprep.subr.bf16.mxu0 0
        %580 = vmatpush2.bf16.msra.mxu0 0
        %581 = vmatprep.subr.bf16.mxu0 0
        %582 = vmatpush2.bf16.msra.mxu0 0
        %583 = vmatprep.subr.bf16.mxu0 0
        %584 = vmatpush2.bf16.msra.mxu0 0
        %585 = vmatprep.subr.bf16.mxu0 0
        %586 = vmatpush2.bf16.msra.mxu0 0
        %587 = vmatprep.subr.bf16.mxu0 0
        %588 = vmatpush2.bf16.msra.mxu0 0
        %589 = vmatprep.mubr.bf16.mxu0 0
        %590 = vmatmul.mubr.bf16.gmra.mxu0 %v453
        %v591 = vpop.f32.mrf.mxu0
        %v592 = vadd.f32 0.0, %v591
        %v593 = vpop.f32.mrf.mxu0
        %v594 = vadd.f32 0.0, %v593
        %v595 = vpop.f32.mrf.mxu0
        %v596 = vadd.f32 0.0, %v595
        %v597 = vpop.f32.mrf.mxu0
        %v598 = vadd.f32 0.0, %v597
        %599 = vmatprep.mubr.bf16.mxu0 0
        %600 = vmatmul.mubr.bf16.gmra.mxu0 %v454
        %v601 = vpop.f32.mrf.mxu0
        %v602 = vadd.f32 0.0, %v601
        %v603 = vpop.f32.mrf.mxu0
        %v604 = vadd.f32 0.0, %v603
        %v605 = vpop.f32.mrf.mxu0
        %v606 = vadd.f32 0.0, %v605
        %v607 = vpop.f32.mrf.mxu0
        %v608 = vadd.f32 0.0, %v607
        %609 = vmatprep.mubr.bf16.mxu0 0
        %610 = vmatmul.mubr.bf16.gmra.mxu0 %v455
        %v611 = vpop.f32.mrf.mxu0
        %v612 = vadd.f32 0.0, %v611
        %v613 = vpop.f32.mrf.mxu0
        %v614 = vadd.f32 0.0, %v613
        %v615 = vpop.f32.mrf.mxu0
        %v616 = vadd.f32 0.0, %v615
        %v617 = vpop.f32.mrf.mxu0
        %v618 = vadd.f32 0.0, %v617
        %619 = vmatprep.mubr.bf16.mxu0 0
        %620 = vmatmul.mubr.bf16.gmra.mxu0 %v456
        %v621 = vpop.f32.mrf.mxu0
        %v622 = vadd.f32 0.0, %v621
        %v623 = vpop.f32.mrf.mxu0
        %v624 = vadd.f32 0.0, %v623
        %v625 = vpop.f32.mrf.mxu0
        %v626 = vadd.f32 0.0, %v625
        %v627 = vpop.f32.mrf.mxu0
        %v628 = vadd.f32 0.0, %v627
        %629 = vmatprep.mubr.bf16.mxu0 0
        %630 = vmatmul.mubr.bf16.gmra.mxu0 %v457
        %v631 = vpop.f32.mrf.mxu0
        %v632 = vadd.f32 0.0, %v631
        %v633 = vpop.f32.mrf.mxu0
        %v634 = vadd.f32 0.0, %v633
        %v635 = vpop.f32.mrf.mxu0
        %v636 = vadd.f32 0.0, %v635
        %v637 = vpop.f32.mrf.mxu0
        %v638 = vadd.f32 0.0, %v637
        %639 = vmatprep.mubr.bf16.mxu0 0
        %640 = vmatmul.mubr.bf16.gmra.mxu0 %v458
        %v641 = vpop.f32.mrf.mxu0
        %v642 = vadd.f32 0.0, %v641
        %v643 = vpop.f32.mrf.mxu0
        %v644 = vadd.f32 0.0, %v643
        %v645 = vpop.f32.mrf.mxu0
        %v646 = vadd.f32 0.0, %v645
        %v647 = vpop.f32.mrf.mxu0
        %v648 = vadd.f32 0.0, %v647
        %649 = vmatprep.mubr.bf16.mxu0 0
        %650 = vmatmul.mubr.bf16.gmra.mxu0 %v459
        %v651 = vpop.f32.mrf.mxu0
        %v652 = vadd.f32 0.0, %v651
        %v653 = vpop.f32.mrf.mxu0
        %v654 = vadd.f32 0.0, %v653
        %v655 = vpop.f32.mrf.mxu0
        %v656 = vadd.f32 0.0, %v655
        %v657 = vpop.f32.mrf.mxu0
        %v658 = vadd.f32 0.0, %v657
        %659 = vmatprep.mubr.bf16.mxu0 0
        %660 = vmatmul.mubr.bf16.gmra.mxu0 %v460
        %v661 = vpop.f32.mrf.mxu0
        %v662 = vadd.f32 0.0, %v661
        %v663 = vpop.f32.mrf.mxu0
        %v664 = vadd.f32 0.0, %v663
        %v665 = vpop.f32.mrf.mxu0
        %v666 = vadd.f32 0.0, %v665
        %v667 = vpop.f32.mrf.mxu0
        %v668 = vadd.f32 0.0, %v667
        %669 = vdwg.mxu0
        %v686 = vunpack.c.l.b16 %v421
        %v687 = vunpack.c.h.b16 %v421
        %v688 = vunpack.c.l.b16 %v422
        %v689 = vunpack.c.h.b16 %v422
        %v690 = vunpack.c.l.b16 %v423
        %v691 = vunpack.c.h.b16 %v423
        %v692 = vunpack.c.l.b16 %v424
        %v693 = vunpack.c.h.b16 %v424
        %v694 = vunpack.c.l.b16 %v425
        %v695 = vunpack.c.h.b16 %v425
        %v696 = vunpack.c.l.b16 %v426
        %v697 = vunpack.c.h.b16 %v426
        %v698 = vunpack.c.l.b16 %v427
        %v699 = vunpack.c.h.b16 %v427
        %v700 = vunpack.c.l.b16 %v428
        %v701 = vunpack.c.h.b16 %v428
        %v702 = vunpack.c.l.b16 %v429
        %v703 = vunpack.c.h.b16 %v429
        %v704 = vunpack.c.l.b16 %v430
        %v705 = vunpack.c.h.b16 %v430
        %v706 = vunpack.c.l.b16 %v431
        %v707 = vunpack.c.h.b16 %v431
        %v708 = vunpack.c.l.b16 %v432
        %v709 = vunpack.c.h.b16 %v432
        %v710 = vunpack.c.l.b16 %v433
        %v711 = vunpack.c.h.b16 %v433
        %v712 = vunpack.c.l.b16 %v434
        %v713 = vunpack.c.h.b16 %v434
        %v714 = vunpack.c.l.b16 %v435
        %v715 = vunpack.c.h.b16 %v435
        %v716 = vunpack.c.l.b16 %v436
        %v717 = vunpack.c.h.b16 %v436
        %v718 = vpack.c.b16 %v688, %v686
        %v719 = vpack.c.b16 %v689, %v687
        %v720 = vpack.c.b16 %v692, %v690
        %v721 = vpack.c.b16 %v693, %v691
        %v722 = vpack.c.b16 %v696, %v694
        %v723 = vpack.c.b16 %v697, %v695
        %v724 = vpack.c.b16 %v700, %v698
        %v725 = vpack.c.b16 %v701, %v699
        %v726 = vpack.c.b16 %v704, %v702
        %v727 = vpack.c.b16 %v705, %v703
        %v728 = vpack.c.b16 %v708, %v706
        %v729 = vpack.c.b16 %v709, %v707
        %v730 = vpack.c.b16 %v712, %v710
        %v731 = vpack.c.b16 %v713, %v711
        %v732 = vpack.c.b16 %v716, %v714
        %v733 = vpack.c.b16 %v717, %v715
        %750 = vmatprep.subr.bf16.mxu0 %v733
        %751 = vmatpush1.bf16.msra.mxu0 %v732
        %752 = vmatprep.subr.bf16.mxu0 %v731
        %753 = vmatpush1.bf16.msra.mxu0 %v730
        %754 = vmatprep.subr.bf16.mxu0 %v729
        %755 = vmatpush1.bf16.msra.mxu0 %v728
        %756 = vmatprep.subr.bf16.mxu0 %v727
        %757 = vmatpush1.bf16.msra.mxu0 %v726
        %758 = vmatprep.subr.bf16.mxu0 %v725
        %759 = vmatpush1.bf16.msra.mxu0 %v724
        %760 = vmatprep.subr.bf16.mxu0 %v723
        %761 = vmatpush1.bf16.msra.mxu0 %v722
        %762 = vmatprep.subr.bf16.mxu0 %v721
        %763 = vmatpush1.bf16.msra.mxu0 %v720
        %764 = vmatprep.subr.bf16.mxu0 %v719
        %765 = vmatpush1.bf16.msra.mxu0 %v718
        %766 = vmatprep.subr.bf16.mxu0 0
        %767 = vmatpush2.bf16.msra.mxu0 0
        %768 = vmatprep.subr.bf16.mxu0 0
        %769 = vmatpush2.bf16.msra.mxu0 0
        %770 = vmatprep.subr.bf16.mxu0 0
        %771 = vmatpush2.bf16.msra.mxu0 0
        %772 = vmatprep.subr.bf16.mxu0 0
        %773 = vmatpush2.bf16.msra.mxu0 0
        %774 = vmatprep.subr.bf16.mxu0 0
        %775 = vmatpush2.bf16.msra.mxu0 0
        %776 = vmatprep.subr.bf16.mxu0 0
        %777 = vmatpush2.bf16.msra.mxu0 0
        %778 = vmatprep.subr.bf16.mxu0 0
        %779 = vmatpush2.bf16.msra.mxu0 0
        %780 = vmatprep.subr.bf16.mxu0 0
        %781 = vmatpush2.bf16.msra.mxu0 0
        %782 = vmatprep.mubr.bf16.mxu0 0
        %783 = vmatmul.mubr.bf16.gmra.mxu0 %v413
        %v784 = vpop.f32.mrf.mxu0
        %v785 = vadd.f32 %v592, %v784
        %v786 = vpop.f32.mrf.mxu0
        %v787 = vadd.f32 %v594, %v786
        %v788 = vpop.f32.mrf.mxu0
        %v789 = vadd.f32 %v596, %v788
        %v790 = vpop.f32.mrf.mxu0
        %v791 = vadd.f32 %v598, %v790
        %792 = vmatprep.mubr.bf16.mxu0 0
        %793 = vmatmul.mubr.bf16.gmra.mxu0 %v414
        %v794 = vpop.f32.mrf.mxu0
        %v795 = vadd.f32 %v602, %v794
        %v796 = vpop.f32.mrf.mxu0
        %v797 = vadd.f32 %v604, %v796
        %v798 = vpop.f32.mrf.mxu0
        %v799 = vadd.f32 %v606, %v798
        %v800 = vpop.f32.mrf.mxu0
        %v801 = vadd.f32 %v608, %v800
        %802 = vmatprep.mubr.bf16.mxu0 0
        %803 = vmatmul.mubr.bf16.gmra.mxu0 %v415
        %v804 = vpop.f32.mrf.mxu0
        %v805 = vadd.f32 %v612, %v804
        %v806 = vpop.f32.mrf.mxu0
        %v807 = vadd.f32 %v614, %v806
        %v808 = vpop.f32.mrf.mxu0
        %v809 = vadd.f32 %v616, %v808
        %v810 = vpop.f32.mrf.mxu0
        %v811 = vadd.f32 %v618, %v810
        %812 = vmatprep.mubr.bf16.mxu0 0
        %813 = vmatmul.mubr.bf16.gmra.mxu0 %v416
        %v814 = vpop.f32.mrf.mxu0
        %v815 = vadd.f32 %v622, %v814
        %v816 = vpop.f32.mrf.mxu0
        %v817 = vadd.f32 %v624, %v816
        %v818 = vpop.f32.mrf.mxu0
        %v819 = vadd.f32 %v626, %v818
        %v820 = vpop.f32.mrf.mxu0
        %v821 = vadd.f32 %v628, %v820
        %822 = vmatprep.mubr.bf16.mxu0 0
        %823 = vmatmul.mubr.bf16.gmra.mxu0 %v417
        %v824 = vpop.f32.mrf.mxu0
        %v825 = vadd.f32 %v632, %v824
        %v826 = vpop.f32.mrf.mxu0
        %v827 = vadd.f32 %v634, %v826
        %v828 = vpop.f32.mrf.mxu0
        %v829 = vadd.f32 %v636, %v828
        %v830 = vpop.f32.mrf.mxu0
        %v831 = vadd.f32 %v638, %v830
        %832 = vmatprep.mubr.bf16.mxu0 0
        %833 = vmatmul.mubr.bf16.gmra.mxu0 %v418
        %v834 = vpop.f32.mrf.mxu0
        %v835 = vadd.f32 %v642, %v834
        %v836 = vpop.f32.mrf.mxu0
        %v837 = vadd.f32 %v644, %v836
        %v838 = vpop.f32.mrf.mxu0
        %v839 = vadd.f32 %v646, %v838
        %v840 = vpop.f32.mrf.mxu0
        %v841 = vadd.f32 %v648, %v840
        %842 = vmatprep.mubr.bf16.mxu0 0
        %843 = vmatmul.mubr.bf16.gmra.mxu0 %v419
        %v844 = vpop.f32.mrf.mxu0
        %v845 = vadd.f32 %v652, %v844
        %v846 = vpop.f32.mrf.mxu0
        %v847 = vadd.f32 %v654, %v846
        %v848 = vpop.f32.mrf.mxu0
        %v849 = vadd.f32 %v656, %v848
        %v850 = vpop.f32.mrf.mxu0
        %v851 = vadd.f32 %v658, %v850
        %852 = vmatprep.mubr.bf16.mxu0 0
        %853 = vmatmul.mubr.bf16.gmra.mxu0 %v420
        %v854 = vpop.f32.mrf.mxu0
        %v855 = vadd.f32 %v662, %v854
        %v856 = vpop.f32.mrf.mxu0
        %v857 = vadd.f32 %v664, %v856
        %v858 = vpop.f32.mrf.mxu0
        %v859 = vadd.f32 %v666, %v858
        %v860 = vpop.f32.mrf.mxu0
        %v861 = vadd.f32 %v668, %v860
        %862 = vdwg.mxu0
        %v863 = vld [vmem:[%s3] sm:$0x3]
        %v865 = vlaneseq
        %v866 = vshrl.u32 %v865, 7
        %v867 = vsub.s32 0, %v866
        %v868 = vrot.slane %v863, %v867
        %v869 = vlaneseq
        %v870 = vshrl.u32 %v869, 7
        %v871 = vsub.s32 1, %v870
        %v872 = vrot.slane %v863, %v871
        %v875 = vadd.f32 %v785, %v868
        %v876 = vadd.f32 %v787, %v872
        %v877 = vadd.f32 %v789, %v868
        %v878 = vadd.f32 %v791, %v872
        %v879 = vadd.f32 %v795, %v868
        %v880 = vadd.f32 %v797, %v872
        %v881 = vadd.f32 %v799, %v868
        %v882 = vadd.f32 %v801, %v872
        %v883 = vadd.f32 %v805, %v868
        %v884 = vadd.f32 %v807, %v872
        %v885 = vadd.f32 %v809, %v868
        %v886 = vadd.f32 %v811, %v872
        %v887 = vadd.f32 %v815, %v868
        %v888 = vadd.f32 %v817, %v872
        %v889 = vadd.f32 %v819, %v868
        %v890 = vadd.f32 %v821, %v872
        %v891 = vadd.f32 %v825, %v868
        %v892 = vadd.f32 %v827, %v872
        %v893 = vadd.f32 %v829, %v868
        %v894 = vadd.f32 %v831, %v872
        %v895 = vadd.f32 %v835, %v868
        %v896 = vadd.f32 %v837, %v872
        %v897 = vadd.f32 %v839, %v868
        %v898 = vadd.f32 %v841, %v872
        %v899 = vadd.f32 %v845, %v868
        %v900 = vadd.f32 %v847, %v872
        %v901 = vadd.f32 %v849, %v868
        %v902 = vadd.f32 %v851, %v872
        %v903 = vadd.f32 %v855, %v868
        %v904 = vadd.f32 %v857, %v872
        %v905 = vadd.f32 %v859, %v868
        %v906 = vadd.f32 %v861, %v872
        %v907 = vmax.f32 %v875, 0.0
        %v908 = vmax.f32 %v876, 0.0
        %v909 = vmax.f32 %v877, 0.0
        %v910 = vmax.f32 %v878, 0.0
        %v911 = vmax.f32 %v879, 0.0
        %v912 = vmax.f32 %v880, 0.0
        %v913 = vmax.f32 %v881, 0.0
        %v914 = vmax.f32 %v882, 0.0
        %v915 = vmax.f32 %v883, 0.0
        %v916 = vmax.f32 %v884, 0.0
        %v917 = vmax.f32 %v885, 0.0
        %v918 = vmax.f32 %v886, 0.0
        %v919 = vmax.f32 %v887, 0.0
        %v920 = vmax.f32 %v888, 0.0
        %v921 = vmax.f32 %v889, 0.0
        %v922 = vmax.f32 %v890, 0.0
        %v923 = vmax.f32 %v891, 0.0
        %v924 = vmax.f32 %v892, 0.0
        %v925 = vmax.f32 %v893, 0.0
        %v926 = vmax.f32 %v894, 0.0
        %v927 = vmax.f32 %v895, 0.0
        %v928 = vmax.f32 %v896, 0.0
        %v929 = vmax.f32 %v897, 0.0
        %v930 = vmax.f32 %v898, 0.0
        %v931 = vmax.f32 %v899, 0.0
        %v932 = vmax.f32 %v900, 0.0
        %v933 = vmax.f32 %v901, 0.0
        %v934 = vmax.f32 %v902, 0.0
        %v935 = vmax.f32 %v903, 0.0
        %v936 = vmax.f32 %v904, 0.0
        %v937 = vmax.f32 %v905, 0.0
        %v938 = vmax.f32 %v906, 0.0
        %v939 = vpack.c.bf16 %v909, %v907
        %v940 = vpack.c.bf16 %v910, %v908
        %v941 = vpack.c.bf16 %v913, %v911
        %v942 = vpack.c.bf16 %v914, %v912
        %v943 = vpack.c.bf16 %v917, %v915
        %v944 = vpack.c.bf16 %v918, %v916
        %v945 = vpack.c.bf16 %v921, %v919
        %v946 = vpack.c.bf16 %v922, %v920
        %v947 = vpack.c.bf16 %v925, %v923
        %v948 = vpack.c.bf16 %v926, %v924
        %v949 = vpack.c.bf16 %v929, %v927
        %v950 = vpack.c.bf16 %v930, %v928
        %v951 = vpack.c.bf16 %v933, %v931
        %v952 = vpack.c.bf16 %v934, %v932
        %v953 = vpack.c.bf16 %v937, %v935
        %v954 = vpack.c.bf16 %v938, %v936
        %v955 = vld [vmem:[#allocation8] sm:$0xf]
        %v956 = vld [vmem:[#allocation8 + $0x4] sm:$0xf]
        %v957 = vld [vmem:[#allocation8 + $0x8] sm:$0xf]
        %v958 = vld [vmem:[#allocation8 + $0xc] sm:$0xf]
        %v959 = vld [vmem:[#allocation8 + $0x10] sm:$0xf]
        %v960 = vld [vmem:[#allocation8 + $0x14] sm:$0xf]
        %v961 = vld [vmem:[#allocation8 + $0x18] sm:$0xf]
        %v962 = vld [vmem:[#allocation8 + $0x1c] sm:$0xf]
        %v963 = vld [vmem:[#allocation8 + $0x20] sm:$0xf]
        %v964 = vld [vmem:[#allocation8 + $0x24] sm:$0xf]
        %v965 = vld [vmem:[#allocation8 + $0x28] sm:$0xf]
        %v966 = vld [vmem:[#allocation8 + $0x2c] sm:$0xf]
        %v967 = vld [vmem:[#allocation8 + $0x30] sm:$0xf]
        %v968 = vld [vmem:[#allocation8 + $0x34] sm:$0xf]
        %v969 = vld [vmem:[#allocation8 + $0x38] sm:$0xf]
        %v970 = vld [vmem:[#allocation8 + $0x3c] sm:$0xf]
        %v971 = vld [vmem:[#allocation8 + $0x40] sm:$0xf]
        %v972 = vld [vmem:[#allocation8 + $0x44] sm:$0xf]
        %v973 = vld [vmem:[#allocation8 + $0x48] sm:$0xf]
        %v974 = vld [vmem:[#allocation8 + $0x4c] sm:$0xf]
        %v975 = vld [vmem:[#allocation8 + $0x50] sm:$0xf]
        %v976 = vld [vmem:[#allocation8 + $0x54] sm:$0xf]
        %v977 = vld [vmem:[#allocation8 + $0x58] sm:$0xf]
        %v978 = vld [vmem:[#allocation8 + $0x5c] sm:$0xf]
        %v979 = vld [vmem:[#allocation8 + $0x60] sm:$0xf]
        %v980 = vld [vmem:[#allocation8 + $0x64] sm:$0xf]
        %v981 = vld [vmem:[#allocation8 + $0x68] sm:$0xf]
        %v982 = vld [vmem:[#allocation8 + $0x6c] sm:$0xf]
        %v983 = vld [vmem:[#allocation8 + $0x70] sm:$0xf]
        %v984 = vld [vmem:[#allocation8 + $0x74] sm:$0xf]
        %v985 = vld [vmem:[#allocation8 + $0x78] sm:$0xf]
        %v986 = vld [vmem:[#allocation8 + $0x7c] sm:$0xf]
        %v987 = vld [vmem:[%s5] sm:$0x1]
        %v989 = vlaneseq
        %v990 = vshrl.u32 %v989, 7
        %v991 = vsub.s32 0, %v990
        %v992 = vrot.slane %v987, %v991
        %v1026 = vunpack.c.l.b16 %v955
        %v1027 = vunpack.c.l.b16 %v956
        %v1028 = vunpack.c.l.b16 %v957
        %v1029 = vunpack.c.l.b16 %v958
        %v1030 = vunpack.c.l.b16 %v959
        %v1031 = vunpack.c.l.b16 %v960
        %v1032 = vunpack.c.l.b16 %v961
        %v1033 = vunpack.c.l.b16 %v962
        %v1034 = vunpack.c.l.b16 %v963
        %v1035 = vunpack.c.l.b16 %v964
        %v1036 = vunpack.c.l.b16 %v965
        %v1037 = vunpack.c.l.b16 %v966
        %v1038 = vunpack.c.l.b16 %v967
        %v1039 = vunpack.c.l.b16 %v968
        %v1040 = vunpack.c.l.b16 %v969
        %v1041 = vunpack.c.l.b16 %v970
        %v1042 = vunpack.c.l.b16 %v971
        %v1043 = vunpack.c.l.b16 %v972
        %v1044 = vunpack.c.l.b16 %v973
        %v1045 = vunpack.c.l.b16 %v974
        %v1046 = vunpack.c.l.b16 %v975
        %v1047 = vunpack.c.l.b16 %v976
        %v1048 = vunpack.c.l.b16 %v977
        %v1049 = vunpack.c.l.b16 %v978
        %v1050 = vunpack.c.l.b16 %v979
        %v1051 = vunpack.c.l.b16 %v980
        %v1052 = vunpack.c.l.b16 %v981
        %v1053 = vunpack.c.l.b16 %v982
        %v1054 = vunpack.c.l.b16 %v983
        %v1055 = vunpack.c.l.b16 %v984
        %v1056 = vunpack.c.l.b16 %v985
        %v1057 = vunpack.c.l.b16 %v986
        %v1058 = vpack.c.b16 %v1027, %v1026
        %v1059 = vpack.c.b16 %v1029, %v1028
        %v1060 = vpack.c.b16 %v1031, %v1030
        %v1061 = vpack.c.b16 %v1033, %v1032
        %v1062 = vpack.c.b16 %v1035, %v1034
        %v1063 = vpack.c.b16 %v1037, %v1036
        %v1064 = vpack.c.b16 %v1039, %v1038
        %v1065 = vpack.c.b16 %v1041, %v1040
        %v1066 = vpack.c.b16 %v1043, %v1042
        %v1067 = vpack.c.b16 %v1045, %v1044
        %v1068 = vpack.c.b16 %v1047, %v1046
        %v1069 = vpack.c.b16 %v1049, %v1048
        %v1070 = vpack.c.b16 %v1051, %v1050
        %v1071 = vpack.c.b16 %v1053, %v1052
        %v1072 = vpack.c.b16 %v1055, %v1054
        %v1073 = vpack.c.b16 %v1057, %v1056
        %1090 = vmatprep.subr.bf16.mxu0 0
        %1091 = vmatpush1.bf16.msra.mxu0 %v1065
        %1092 = vmatprep.subr.bf16.mxu0 0
        %1093 = vmatpush1.bf16.msra.mxu0 %v1064
        %1094 = vmatprep.subr.bf16.mxu0 0
        %1095 = vmatpush1.bf16.msra.mxu0 %v1063
        %1096 = vmatprep.subr.bf16.mxu0 0
        %1097 = vmatpush1.bf16.msra.mxu0 %v1062
        %1098 = vmatprep.subr.bf16.mxu0 0
        %1099 = vmatpush1.bf16.msra.mxu0 %v1061
        %1100 = vmatprep.subr.bf16.mxu0 0
        %1101 = vmatpush1.bf16.msra.mxu0 %v1060
        %1102 = vmatprep.subr.bf16.mxu0 0
        %1103 = vmatpush1.bf16.msra.mxu0 %v1059
        %1104 = vmatprep.subr.bf16.mxu0 0
        %1105 = vmatpush1.bf16.msra.mxu0 %v1058
        %1106 = vmatprep.subr.bf16.mxu0 0
        %1107 = vmatpush2.bf16.msra.mxu0 %v1073
        %1108 = vmatprep.subr.bf16.mxu0 0
        %1109 = vmatpush2.bf16.msra.mxu0 %v1072
        %1110 = vmatprep.subr.bf16.mxu0 0
        %1111 = vmatpush2.bf16.msra.mxu0 %v1071
        %1112 = vmatprep.subr.bf16.mxu0 0
        %1113 = vmatpush2.bf16.msra.mxu0 %v1070
        %1114 = vmatprep.subr.bf16.mxu0 0
        %1115 = vmatpush2.bf16.msra.mxu0 %v1069
        %1116 = vmatprep.subr.bf16.mxu0 0
        %1117 = vmatpush2.bf16.msra.mxu0 %v1068
        %1118 = vmatprep.subr.bf16.mxu0 0
        %1119 = vmatpush2.bf16.msra.mxu0 %v1067
        %1120 = vmatprep.subr.bf16.mxu0 0
        %1121 = vmatpush2.bf16.msra.mxu0 %v1066
        %1122 = vmatprep.mubr.bf16.mxu0 %v940
        %1123 = vmatmul.mubr.bf16.gmra.mxu0 %v939
        %v1124 = vpop.f32.mrf.mxu0
        %v1125 = vadd.f32 %v992, %v1124
        %v1126 = vpop.f32.mrf.mxu0
        %v1127 = vpop.f32.mrf.mxu0
        %v1128 = vadd.f32 %v992, %v1127
        %v1129 = vpop.f32.mrf.mxu0
        %1130 = vmatprep.mubr.bf16.mxu0 %v942
        %1131 = vmatmul.mubr.bf16.gmra.mxu0 %v941
        %v1132 = vpop.f32.mrf.mxu0
        %v1133 = vadd.f32 %v992, %v1132
        %v1134 = vpop.f32.mrf.mxu0
        %v1135 = vpop.f32.mrf.mxu0
        %v1136 = vadd.f32 %v992, %v1135
        %v1137 = vpop.f32.mrf.mxu0
        %1138 = vmatprep.mubr.bf16.mxu0 %v944
        %1139 = vmatmul.mubr.bf16.gmra.mxu0 %v943
        %v1140 = vpop.f32.mrf.mxu0
        %v1141 = vadd.f32 %v992, %v1140
        %v1142 = vpop.f32.mrf.mxu0
        %v1143 = vpop.f32.mrf.mxu0
        %v1144 = vadd.f32 %v992, %v1143
        %v1145 = vpop.f32.mrf.mxu0
        %1146 = vmatprep.mubr.bf16.mxu0 %v946
        %1147 = vmatmul.mubr.bf16.gmra.mxu0 %v945
        %v1148 = vpop.f32.mrf.mxu0
        %v1149 = vadd.f32 %v992, %v1148
        %v1150 = vpop.f32.mrf.mxu0
        %v1151 = vpop.f32.mrf.mxu0
        %v1152 = vadd.f32 %v992, %v1151
        %v1153 = vpop.f32.mrf.mxu0
        %1154 = vmatprep.mubr.bf16.mxu0 %v948
        %1155 = vmatmul.mubr.bf16.gmra.mxu0 %v947
        %v1156 = vpop.f32.mrf.mxu0
        %v1157 = vadd.f32 %v992, %v1156
        %v1158 = vpop.f32.mrf.mxu0
        %v1159 = vpop.f32.mrf.mxu0
        %v1160 = vadd.f32 %v992, %v1159
        %v1161 = vpop.f32.mrf.mxu0
        %1162 = vmatprep.mubr.bf16.mxu0 %v950
        %1163 = vmatmul.mubr.bf16.gmra.mxu0 %v949
        %v1164 = vpop.f32.mrf.mxu0
        %v1165 = vadd.f32 %v992, %v1164
        %v1166 = vpop.f32.mrf.mxu0
        %v1167 = vpop.f32.mrf.mxu0
        %v1168 = vadd.f32 %v992, %v1167
        %v1169 = vpop.f32.mrf.mxu0
        %1170 = vmatprep.mubr.bf16.mxu0 %v952
        %1171 = vmatmul.mubr.bf16.gmra.mxu0 %v951
        %v1172 = vpop.f32.mrf.mxu0
        %v1173 = vadd.f32 %v992, %v1172
        %v1174 = vpop.f32.mrf.mxu0
        %v1175 = vpop.f32.mrf.mxu0
        %v1176 = vadd.f32 %v992, %v1175
        %v1177 = vpop.f32.mrf.mxu0
        %1178 = vmatprep.mubr.bf16.mxu0 %v954
        %1179 = vmatmul.mubr.bf16.gmra.mxu0 %v953
        %v1180 = vpop.f32.mrf.mxu0
        %v1181 = vadd.f32 %v992, %v1180
        %v1182 = vpop.f32.mrf.mxu0
        %v1183 = vpop.f32.mrf.mxu0
        %v1184 = vadd.f32 %v992, %v1183
        %v1185 = vpop.f32.mrf.mxu0
        %1186 = vdwg.mxu0
        %1187 = vadd.xlane.f32.xlu0 %v1125
        %v1188 = vpop.xlane.xlu0 %1187
        %1189 = vadd.xlane.f32.xlu0 %v1128
        %v1190 = vpop.xlane.xlu0 %1189
        %1191 = vadd.xlane.f32.xlu0 %v1133
        %v1192 = vpop.xlane.xlu0 %1191
        %1193 = vadd.xlane.f32.xlu0 %v1136
        %v1194 = vpop.xlane.xlu0 %1193
        %1195 = vadd.xlane.f32.xlu0 %v1141
        %v1196 = vpop.xlane.xlu0 %1195
        %1197 = vadd.xlane.f32.xlu0 %v1144
        %v1198 = vpop.xlane.xlu0 %1197
        %1199 = vadd.xlane.f32.xlu0 %v1149
        %v1200 = vpop.xlane.xlu0 %1199
        %1201 = vadd.xlane.f32.xlu0 %v1152
        %v1202 = vpop.xlane.xlu0 %1201
        %1203 = vadd.xlane.f32.xlu0 %v1157
        %v1204 = vpop.xlane.xlu0 %1203
        %1205 = vadd.xlane.f32.xlu0 %v1160
        %v1206 = vpop.xlane.xlu0 %1205
        %1207 = vadd.xlane.f32.xlu0 %v1165
        %v1208 = vpop.xlane.xlu0 %1207
        %1209 = vadd.xlane.f32.xlu0 %v1168
        %v1210 = vpop.xlane.xlu0 %1209
        %1211 = vadd.xlane.f32.xlu0 %v1173
        %v1212 = vpop.xlane.xlu0 %1211
        %1213 = vadd.xlane.f32.xlu0 %v1176
        %v1214 = vpop.xlane.xlu0 %1213
        %1215 = vadd.xlane.f32.xlu0 %v1181
        %v1216 = vpop.xlane.xlu0 %1215
        %1217 = vadd.xlane.f32.xlu0 %v1184
        %v1218 = vpop.xlane.xlu0 %1217
        %v1219 = vrcp.pop 128.0
        %v1220 = vmul.f32 %v1188, %v1219
        %v1221 = vmul.f32 %v1190, %v1219
        %v1222 = vmul.f32 %v1192, %v1219
        %v1223 = vmul.f32 %v1194, %v1219
        %v1224 = vmul.f32 %v1196, %v1219
        %v1225 = vmul.f32 %v1198, %v1219
        %v1226 = vmul.f32 %v1200, %v1219
        %v1227 = vmul.f32 %v1202, %v1219
        %v1228 = vmul.f32 %v1204, %v1219
        %v1229 = vmul.f32 %v1206, %v1219
        %v1230 = vmul.f32 %v1208, %v1219
        %v1231 = vmul.f32 %v1210, %v1219
        %v1232 = vmul.f32 %v1212, %v1219
        %v1233 = vmul.f32 %v1214, %v1219
        %v1234 = vmul.f32 %v1216, %v1219
        %v1235 = vmul.f32 %v1218, %v1219
        %v1236 = vsub.f32 %v1125, %v1220
        %v1237 = vsub.f32 %v1128, %v1221
        %v1238 = vsub.f32 %v1133, %v1222
        %v1239 = vsub.f32 %v1136, %v1223
        %v1240 = vsub.f32 %v1141, %v1224
        %v1241 = vsub.f32 %v1144, %v1225
        %v1242 = vsub.f32 %v1149, %v1226
        %v1243 = vsub.f32 %v1152, %v1227
        %v1244 = vsub.f32 %v1157, %v1228
        %v1245 = vsub.f32 %v1160, %v1229
        %v1246 = vsub.f32 %v1165, %v1230
        %v1247 = vsub.f32 %v1168, %v1231
        %v1248 = vsub.f32 %v1173, %v1232
        %v1249 = vsub.f32 %v1176, %v1233
        %v1250 = vsub.f32 %v1181, %v1234
        %v1251 = vsub.f32 %v1184, %v1235
        %v1252 = vmul.f32 %v1236, %v1236
        %v1253 = vmul.f32 %v1237, %v1237
        %v1254 = vmul.f32 %v1238, %v1238
        %v1255 = vmul.f32 %v1239, %v1239
        %v1256 = vmul.f32 %v1240, %v1240
        %v1257 = vmul.f32 %v1241, %v1241
        %v1258 = vmul.f32 %v1242, %v1242
        %v1259 = vmul.f32 %v1243, %v1243
        %v1260 = vmul.f32 %v1244, %v1244
        %v1261 = vmul.f32 %v1245, %v1245
        %v1262 = vmul.f32 %v1246, %v1246
        %v1263 = vmul.f32 %v1247, %v1247
        %v1264 = vmul.f32 %v1248, %v1248
        %v1265 = vmul.f32 %v1249, %v1249
        %v1266 = vmul.f32 %v1250, %v1250
        %v1267 = vmul.f32 %v1251, %v1251
        %1268 = vadd.xlane.f32.xlu0 %v1252
        %v1269 = vpop.xlane.xlu0 %1268
        %1270 = vadd.xlane.f32.xlu0 %v1253
        %v1271 = vpop.xlane.xlu0 %1270
        %1272 = vadd.xlane.f32.xlu0 %v1254
        %v1273 = vpop.xlane.xlu0 %1272
        %1274 = vadd.xlane.f32.xlu0 %v1255
        %v1275 = vpop.xlane.xlu0 %1274
        %1276 = vadd.xlane.f32.xlu0 %v1256
        %v1277 = vpop.xlane.xlu0 %1276
        %1278 = vadd.xlane.f32.xlu0 %v1257
        %v1279 = vpop.xlane.xlu0 %1278
        %1280 = vadd.xlane.f32.xlu0 %v1258
        %v1281 = vpop.xlane.xlu0 %1280
        %1282 = vadd.xlane.f32.xlu0 %v1259
        %v1283 = vpop.xlane.xlu0 %1282
        %1284 = vadd.xlane.f32.xlu0 %v1260
        %v1285 = vpop.xlane.xlu0 %1284
        %1286 = vadd.xlane.f32.xlu0 %v1261
        %v1287 = vpop.xlane.xlu0 %1286
        %1288 = vadd.xlane.f32.xlu0 %v1262
        %v1289 = vpop.xlane.xlu0 %1288
        %1290 = vadd.xlane.f32.xlu0 %v1263
        %v1291 = vpop.xlane.xlu0 %1290
        %1292 = vadd.xlane.f32.xlu0 %v1264
        %v1293 = vpop.xlane.xlu0 %1292
        %1294 = vadd.xlane.f32.xlu0 %v1265
        %v1295 = vpop.xlane.xlu0 %1294
        %1296 = vadd.xlane.f32.xlu0 %v1266
        %v1297 = vpop.xlane.xlu0 %1296
        %1298 = vadd.xlane.f32.xlu0 %v1267
        %v1299 = vpop.xlane.xlu0 %1298
        %v1300 = vmul.f32 %v1269, %v1219
        %v1301 = vmul.f32 %v1271, %v1219
        %v1302 = vmul.f32 %v1273, %v1219
        %v1303 = vmul.f32 %v1275, %v1219
        %v1304 = vmul.f32 %v1277, %v1219
        %v1305 = vmul.f32 %v1279, %v1219
        %v1306 = vmul.f32 %v1281, %v1219
        %v1307 = vmul.f32 %v1283, %v1219
        %v1308 = vmul.f32 %v1285, %v1219
        %v1309 = vmul.f32 %v1287, %v1219
        %v1310 = vmul.f32 %v1289, %v1219
        %v1311 = vmul.f32 %v1291, %v1219
        %v1312 = vmul.f32 %v1293, %v1219
        %v1313 = vmul.f32 %v1295, %v1219
        %v1314 = vmul.f32 %v1297, %v1219
        %v1315 = vmul.f32 %v1299, %v1219
        %v1316 = vadd.f32 %v1300, 1e-05
        %v1317 = vadd.f32 %v1301, 1e-05
        %v1318 = vadd.f32 %v1302, 1e-05
        %v1319 = vadd.f32 %v1303, 1e-05
        %v1320 = vadd.f32 %v1304, 1e-05
        %v1321 = vadd.f32 %v1305, 1e-05
        %v1322 = vadd.f32 %v1306, 1e-05
        %v1323 = vadd.f32 %v1307, 1e-05
        %v1324 = vadd.f32 %v1308, 1e-05
        %v1325 = vadd.f32 %v1309, 1e-05
        %v1326 = vadd.f32 %v1310, 1e-05
        %v1327 = vadd.f32 %v1311, 1e-05
        %v1328 = vadd.f32 %v1312, 1e-05
        %v1329 = vadd.f32 %v1313, 1e-05
        %v1330 = vadd.f32 %v1314, 1e-05
        %v1331 = vadd.f32 %v1315, 1e-05
        %v1332 = vrsqrt.pop %v1316
        %v1333 = vrsqrt.pop %v1317
        %v1334 = vrsqrt.pop %v1318
        %v1335 = vrsqrt.pop %v1319
        %v1336 = vrsqrt.pop %v1320
        %v1337 = vrsqrt.pop %v1321
        %v1338 = vrsqrt.pop %v1322
        %v1339 = vrsqrt.pop %v1323
        %v1340 = vrsqrt.pop %v1324
        %v1341 = vrsqrt.pop %v1325
        %v1342 = vrsqrt.pop %v1326
        %v1343 = vrsqrt.pop %v1327
        %v1344 = vrsqrt.pop %v1328
        %v1345 = vrsqrt.pop %v1329
        %v1346 = vrsqrt.pop %v1330
        %v1347 = vrsqrt.pop %v1331
        %v1348 = vmul.f32 %v1236, %v1332
        %v1349 = vmul.f32 %v1237, %v1333
        %v1350 = vmul.f32 %v1238, %v1334
        %v1351 = vmul.f32 %v1239, %v1335
        %v1352 = vmul.f32 %v1240, %v1336
        %v1353 = vmul.f32 %v1241, %v1337
        %v1354 = vmul.f32 %v1242, %v1338
        %v1355 = vmul.f32 %v1243, %v1339
        %v1356 = vmul.f32 %v1244, %v1340
        %v1357 = vmul.f32 %v1245, %v1341
        %v1358 = vmul.f32 %v1246, %v1342
        %v1359 = vmul.f32 %v1247, %v1343
        %v1360 = vmul.f32 %v1248, %v1344
        %v1361 = vmul.f32 %v1249, %v1345
        %v1362 = vmul.f32 %v1250, %v1346
        %v1363 = vmul.f32 %v1251, %v1347
        %v1364 = vld [vmem:[%s6] sm:$0x1]
        %v1366 = vlaneseq
        %v1367 = vshrl.u32 %v1366, 7
        %v1368 = vsub.s32 0, %v1367
        %v1369 = vrot.slane %v1364, %v1368
        %v1371 = vmul.f32 %v1348, %v1369
        %v1372 = vmul.f32 %v1349, %v1369
        %v1373 = vmul.f32 %v1350, %v1369
        %v1374 = vmul.f32 %v1351, %v1369
        %v1375 = vmul.f32 %v1352, %v1369
        %v1376 = vmul.f32 %v1353, %v1369
        %v1377 = vmul.f32 %v1354, %v1369
        %v1378 = vmul.f32 %v1355, %v1369
        %v1379 = vmul.f32 %v1356, %v1369
        %v1380 = vmul.f32 %v1357, %v1369
        %v1381 = vmul.f32 %v1358, %v1369
        %v1382 = vmul.f32 %v1359, %v1369
        %v1383 = vmul.f32 %v1360, %v1369
        %v1384 = vmul.f32 %v1361, %v1369
        %v1385 = vmul.f32 %v1362, %v1369
        %v1386 = vmul.f32 %v1363, %v1369
        %v1387 = vld [vmem:[%s7] sm:$0x1]
        %v1389 = vlaneseq
        %v1390 = vshrl.u32 %v1389, 7
        %v1391 = vsub.s32 0, %v1390
        %v1392 = vrot.slane %v1387, %v1391
        %v1394 = vadd.f32 %v1371, %v1392
        %v1395 = vadd.f32 %v1372, %v1392
        %v1396 = vadd.f32 %v1373, %v1392
        %v1397 = vadd.f32 %v1374, %v1392
        %v1398 = vadd.f32 %v1375, %v1392
        %v1399 = vadd.f32 %v1376, %v1392
        %v1400 = vadd.f32 %v1377, %v1392
        %v1401 = vadd.f32 %v1378, %v1392
        %v1402 = vadd.f32 %v1379, %v1392
        %v1403 = vadd.f32 %v1380, %v1392
        %v1404 = vadd.f32 %v1381, %v1392
        %v1405 = vadd.f32 %v1382, %v1392
        %v1406 = vadd.f32 %v1383, %v1392
        %v1407 = vadd.f32 %v1384, %v1392
        %v1408 = vadd.f32 %v1385, %v1392
        %v1409 = vadd.f32 %v1386, %v1392
        %1410 = vst [vmem:[%s392] sm:$0xff] %v1394
        %1411 = vst [vmem:[%s392 + $0x8] sm:$0xff] %v1395
        %1412 = vst [vmem:[%s392 + $0x10] sm:$0xff] %v1396
        %1413 = vst [vmem:[%s392 + $0x18] sm:$0xff] %v1397
        %1414 = vst [vmem:[%s392 + $0x20] sm:$0xff] %v1398
        %1415 = vst [vmem:[%s392 + $0x28] sm:$0xff] %v1399
        %1416 = vst [vmem:[%s392 + $0x30] sm:$0xff] %v1400
        %1417 = vst [vmem:[%s392 + $0x38] sm:$0xff] %v1401
        %1418 = vst [vmem:[%s392 + $0x40] sm:$0xff] %v1402
        %1419 = vst [vmem:[%s392 + $0x48] sm:$0xff] %v1403
        %1420 = vst [vmem:[%s392 + $0x50] sm:$0xff] %v1404
        %1421 = vst [vmem:[%s392 + $0x58] sm:$0xff] %v1405
        %1422 = vst [vmem:[%s392 + $0x60] sm:$0xff] %v1406
        %1423 = vst [vmem:[%s392 + $0x68] sm:$0xff] %v1407
        %1424 = vst [vmem:[%s392 + $0x70] sm:$0xff] %v1408
        %1425 = vst [vmem:[%s392 + $0x78] sm:$0xff] %v1409
        %s1426 = sand.u32 %s215, 1
        %s1427 = scalar_lea.sflag [#allocation4], %s1426
        %s1428 = sand.u32 %s215, 1
        %s1429 = smul.addr %s1428, 128
        %s1430 = scalar_lea.vmem [#allocation10], %s1429
        // Predicated region
        $region69: #{_cat_nonlin_pallas.1} parent=51 // pred_check
          %p1431 = pneg %p225
        $region70: #{_cat_nonlin_pallas.1} parent=51 // pred_check_branch
          %1433 = sbr.rel (%p1431) target = $region72
        $region71: #{_cat_nonlin_pallas.1} parent=51 // pred_region
          %s1434 = smul.u32 16, %s29
          %s1436 = ssub.s32 2048, 2048
          %1437 = vsyncadd %s1427, %s1436
          %s1438 = smul.addr %s1434, 128
          %s1439 = scalar_lea.hbm %s8, %s1438
          %s1440 = sshll.u32 %s1430, 4
          %s1441 = int_to_ptr.vmem [resolvable:$true] %s1440
          %1446 = dma.vmem_to_hbm [thread:$0]  %s1441, 2048, %s1439, %s1427, 128, 128, 8
        $region72: #{_cat_nonlin_pallas.1} parent=51 // pred_fallthru
          _
      $region52: #{_cat_nonlin_pallas.1} parent=5 // pred_fallthru
        _
      %p1447 = scmp.le.s32.totalorder 2, %s24
      // Predicated region
      $region73: #{_cat_nonlin_pallas.1} parent=5 // pred_check
        %p1448 = pneg %p1447
      $region74: #{_cat_nonlin_pallas.1} parent=5 // pred_check_branch
        %1450 = sbr.rel (%p1448) target = $region76
      $region75: #{_cat_nonlin_pallas.1} parent=5 // pred_region
        %s1451 = ssub.s32 %s24, 2
        // Predicated region
        $region77: #{_cat_nonlin_pallas.1} parent=75 // pred_check
          %p1452 = pneg %p231
        $region78: #{_cat_nonlin_pallas.1} parent=75 // pred_check_branch
          %1454 = sbr.rel (%p1452) target = $region80
        $region79: #{_cat_nonlin_pallas.1} parent=75 // pred_region
          %s1455 = sand.u32 %s216, 1
          %s1456 = scalar_lea.sflag [#allocation4], %s1455
          %s1457 = sand.u32 %s216, 1
          %s1458 = smul.addr %s1457, 128
          %s1459 = scalar_lea.vmem [#allocation10], %s1458
          %1460 = dma.done %s1456, 2048
        $region80: #{_cat_nonlin_pallas.1} parent=75 // pred_fallthru
          _
      $region76: #{_cat_nonlin_pallas.1} parent=5 // pred_fallthru
        _
    $region6: #{_cat_nonlin_pallas.1} parent=1 // loop_footer
      %s28 = sadd.s32 1, %s24
    $region7: #{_cat_nonlin_pallas.1} parent=1 // loop_footer_branch
      %23 = sbr.rel target = $region3
    $region8: #{_cat_nonlin_pallas.1} parent=1 // loop_exit
      _
    %1461 = vsyncpa [#allocation3], 1
    %s1462 = scalar_lea.sflag [#allocation3], 1
    %1463 = vsyncpa %s1462, 1
    %1464 = vsyncpa [#allocation6], 1
    %s1465 = scalar_lea.sflag [#allocation6], 1
    %1466 = vsyncpa %s1465, 1
    %1467 = vsyncpa [#allocation9], 1
    %1468 = vsyncpa [#allocation4], 1
    %s1469 = scalar_lea.sflag [#allocation4], 1
    %1470 = vsyncpa %s1469, 1

</llo_original>
